<compile_context>
chip_gen: v7x
topology: tpu7x:2x2x1
jax: 0.10.0
libtpu: 0.0.40
codegen_flags: <defaults>
</compile_context>

<pallas_src>
import functools

import jax
import jax.numpy as jnp
from jax.experimental import pallas as pl
from jax.experimental.pallas import tpu as pltpu


# ---------------------------------------------------------------------------
# Fused (im2col conv3x3 + BN scale/bias + residual + ReLU) Pallas kernel.
# ---------------------------------------------------------------------------
def _conv_mm_kernel(x_ref, w_ref, scale_ref, bias_ref, *rest, relu, has_res):
    """One (batch image, HW tile) block per grid step.

    x_ref:     (1, 9*Cin, T)   bf16 im2col patches (T = HW tile, lane axis)
    w_ref:     (Cout, 9*Cin)   bf16 reordered conv weights
    scale_ref: (Cout, 1)       f32 folded BN scale (ones when no norm)
    bias_ref:  (Cout, 1)       f32 folded BN bias  (zeros when no norm)
    rest:      ([res_ref (1, Cout, T)], out_ref (1, Cout, T))
    """
    if has_res:
        res_ref, out_ref = rest
    else:
        (out_ref,) = rest

    # Single MXU matmul, K = 9*Cin, f32 accumulation.
    acc = jnp.dot(w_ref[...], x_ref[0], preferred_element_type=jnp.float32)

    out = acc * scale_ref[...] + bias_ref[...]            # (Cout, T), f32 epilogue
    if has_res:
        out = out + res_ref[0].astype(jnp.float32)
    if relu:
        out = jnp.maximum(out, 0.0)
    out_ref[0] = out.astype(out_ref.dtype)


def _pick_tile(hw):
    """Largest lane-dense (multiple-of-128) tile dividing HW, else whole HW."""
    for t in (1024, 512, 256, 128):
        if hw % t == 0:
            return t
    return hw


def conv3x3_block(x, w_oihw, scale, bias, *, stride=1, relu=True, residual=None,
                  compute_dtype=jnp.bfloat16):
    """Fused conv3x3(pad=1, stride 1|2) + per-channel scale/bias
    + optional residual add + optional ReLU.  NCHW in, NCHW out (f32).

    x: (N, Cin, H, W) f32.  w_oihw: PyTorch layout (Cout, Cin, 3, 3).
    """
    n, cin, h, w = x.shape
    cout = w_oihw.shape[0]
    hout = (h - 1) // stride + 1
    wout = (w - 1) // stride + 1
    hw = hout * wout
    k = 9 * cin

    # --- wrapper-side im2col (layout plumbing; zero pad fuses into it) ------
    xp = jnp.pad(x, ((0, 0), (0, 0), (1, 1), (1, 1)))
    taps = []
    for dy in range(3):
        for dx in range(3):
            taps.append(xp[:, :,
                           dy:dy + (hout - 1) * stride + 1:stride,
                           dx:dx + (wout - 1) * stride + 1:stride])
    # (N, 9*Cin, Hout, Wout) -> (N, 9*Cin, HW), tap-major / cin-minor along K.
    patches = jnp.concatenate(taps, axis=1).reshape(n, k, hw).astype(compute_dtype)

    # Weights to (Cout, 9*Cin), matching the patches' K ordering.
    w2 = jnp.transpose(w_oihw, (0, 2, 3, 1)).reshape(cout, k).astype(compute_dtype)
    scale2 = jnp.reshape(scale, (cout, 1)).astype(jnp.float32)
    bias2 = jnp.reshape(bias, (cout, 1)).astype(jnp.float32)

    t_hw = _pick_tile(hw)
    n_t = hw // t_hw

    in_specs = [
        pl.BlockSpec((1, k, t_hw), lambda i, j: (i, 0, j)),
        pl.BlockSpec((cout, k), lambda i, j: (0, 0)),
        pl.BlockSpec((cout, 1), lambda i, j: (0, 0)),
        pl.BlockSpec((cout, 1), lambda i, j: (0, 0)),
    ]
    args = [patches, w2, scale2, bias2]
    if residual is not None:
        args.append(jnp.reshape(residual, (n, cout, hw)))
        in_specs.append(pl.BlockSpec((1, cout, t_hw), lambda i, j: (i, 0, j)))

    # --- cost estimate & VMEM budget ----------------------------------------
    itemsize = jnp.dtype(compute_dtype).itemsize
    flops = 2 * n * hw * k * cout
    bytes_accessed = (patches.size * itemsize + w2.size * itemsize
                      + (scale2.size + bias2.size) * 4
                      + n * cout * hw * 4 * (2 if residual is not None else 1))
    act_bytes = cout * t_hw * 4
    need = (2 * k * t_hw * itemsize                       # double-buffered patches
            + 2 * act_bytes * (2 if residual is not None else 1)
            + 2 * cout * k * itemsize + 4 * cout * 4)     # weights + scale/bias
    vmem_limit = int(min(max(4 * need, 8 << 20), 32 << 20))

    kernel = functools.partial(_conv_mm_kernel, relu=relu,
                               has_res=residual is not None)

    out = pl.pallas_call(
        kernel,
        grid=(n, n_t),
        in_specs=in_specs,
        out_specs=pl.BlockSpec((1, cout, t_hw), lambda i, j: (i, 0, j)),
        out_shape=jax.ShapeDtypeStruct((n, cout, hw), jnp.float32),
        compiler_params=pltpu.CompilerParams(
            dimension_semantics=("parallel", "parallel"),
            vmem_limit_bytes=vmem_limit),
        cost_estimate=pl.CostEstimate(flops=flops, transcendentals=0,
                                      bytes_accessed=bytes_accessed),
    )(*args)
    return out.reshape(n, cout, hout, wout)


# ---------------------------------------------------------------------------
# Module composition (forward-pass semantics of ResUnetSkipConnectionBlock).
# ---------------------------------------------------------------------------
def _fold_bn(bn, eps=1e-5):
    scale = bn["gamma"] * jax.lax.rsqrt(bn["var"] + eps)
    bias = bn["beta"] - bn["mean"] * scale
    return scale, bias


def residual_block_forward(h, p):
    """PyTorch ResidualBlock: relu(bn2(conv2(relu(bn1(conv1(h))))) + h)."""
    s1, b1 = _fold_bn(p["bn1"])
    s2, b2 = _fold_bn(p["bn2"])
    t = conv3x3_block(h, p["w1"], s1, b1, stride=1, relu=True)
    return conv3x3_block(t, p["w2"], s2, b2, stride=1, relu=True, residual=h)


def res_unet_innermost_forward(params, x):
    """ResUnetSkipConnectionBlock(innermost=True, norm_layer=BatchNorm2d, eval).

    forward(x) = cat([x, model(x)], dim=1) with
      model = Conv3x3(s=2) -> ReLU -> 2x ResidualBlock(inner_nc)
              -> Upsample(2x nearest) -> Conv3x3 -> BN -> ReLU
              -> 2x ResidualBlock(outer_nc)
    x: (N, input_nc, H, W) NCHW, f32.
    """
    inner_nc = params["down_w"].shape[0]
    one = jnp.ones((inner_nc,), jnp.float32)
    zero = jnp.zeros((inner_nc,), jnp.float32)

    h = conv3x3_block(x, params["down_w"], one, zero, stride=2, relu=True)
    h = residual_block_forward(h, params["rd1"])
    h = residual_block_forward(h, params["rd2"])

    hu = jnp.repeat(jnp.repeat(h, 2, axis=2), 2, axis=3)     # nearest 2x upsample
    su, bu = _fold_bn(params["up_bn"])
    u = conv3x3_block(hu, params["up_w"], su, bu, stride=1, relu=True)
    u = residual_block_forward(u, params["ru1"])
    u = residual_block_forward(u, params["ru2"])

    return jnp.concatenate([x, u], axis=1)                   # skip connection


# ---------------------------------------------------------------------------
# Parameter init (deterministic) and a plain-JAX reference for verification.
# The reference mirrors the kernel's bf16 MXU operands (f32 accumulation), so
# the check isolates kernel logic from bf16 operand rounding.
# ---------------------------------------------------------------------------
def _init_bn(key, c):
    k1, k2, k3, k4 = jax.random.split(key, 4)
    return dict(
        gamma=1.0 + 0.1 * jax.random.normal(k1, (c,), jnp.float32),
        beta=0.1 * jax.random.normal(k2, (c,), jnp.float32),
        mean=0.1 * jax.random.normal(k3, (c,), jnp.float32),
        var=0.5 + jax.random.uniform(k4, (c,), dtype=jnp.float32),
    )


def _init_conv(key, cout, cin):
    return jax.random.normal(key, (cout, cin, 3, 3), jnp.float32) / jnp.sqrt(9.0 * cin)


def _init_resblock(key, c):
    k1, k2, k3, k4 = jax.random.split(key, 4)
    return dict(w1=_init_conv(k1, c, c), bn1=_init_bn(k2, c),
                w2=_init_conv(k3, c, c), bn2=_init_bn(k4, c))


def init_params(key, *, outer_nc, inner_nc, input_nc):
    ks = jax.random.split(key, 7)
    return dict(
        down_w=_init_conv(ks[0], inner_nc, input_nc),
        rd1=_init_resblock(ks[1], inner_nc),
        rd2=_init_resblock(ks[2], inner_nc),
        up_w=_init_conv(ks[3], outer_nc, inner_nc),
        up_bn=_init_bn(ks[4], outer_nc),
        ru1=_init_resblock(ks[5], outer_nc),
        ru2=_init_resblock(ks[6], outer_nc),
    )


def _conv_ref(x, w, stride, compute_dtype=jnp.bfloat16):
    return jax.lax.conv_general_dilated(
        x.astype(compute_dtype), w.astype(compute_dtype),
        (stride, stride), ((1, 1), (1, 1)),
        dimension_numbers=("NCHW", "OIHW", "NCHW"),
        preferred_element_type=jnp.float32)


def _affine_ref(x, scale, bias, res=None, relu=True):
    y = x * scale[None, :, None, None] + bias[None, :, None, None]
    if res is not None:
        y = y + res
    return jnp.maximum(y, 0.0) if relu else y


def _resblock_ref(h, p):
    s1, b1 = _fold_bn(p["bn1"])
    s2, b2 = _fold_bn(p["bn2"])
    t = _affine_ref(_conv_ref(h, p["w1"], 1), s1, b1)
    return _affine_ref(_conv_ref(t, p["w2"], 1), s2, b2, res=h)


def res_unet_innermost_ref(params, x):
    h = jnp.maximum(_conv_ref(x, params["down_w"], 2), 0.0)
    h = _resblock_ref(h, params["rd1"])
    h = _resblock_ref(h, params["rd2"])
    hu = jnp.repeat(jnp.repeat(h, 2, axis=2), 2, axis=3)
    su, bu = _fold_bn(params["up_bn"])
    u = _affine_ref(_conv_ref(hu, params["up_w"], 1), su, bu)
    u = _resblock_ref(u, params["ru1"])
    u = _resblock_ref(u, params["ru2"])
    return jnp.concatenate([x, u], axis=1)


if __name__ == "__main__":
    key = jax.random.PRNGKey(0)
    kx, kp = jax.random.split(key)

    n, input_nc, h, w = 2, 4, 16, 16
    outer_nc, inner_nc = 4, 8           # innermost: input_nc defaults to outer_nc
    x = jax.random.uniform(kx, (n, input_nc, h, w), dtype=jnp.float32)
    params = init_params(kp, outer_nc=outer_nc, inner_nc=inner_nc, input_nc=input_nc)

    fwd = jax.jit(res_unet_innermost_forward)
    y = fwd(params, x)
    jax.block_until_ready(y)

    y_ref = res_unet_innermost_ref(params, x)
    assert y.shape == (n, input_nc + outer_nc, h, w), y.shape
    err = float(jnp.max(jnp.abs(y - y_ref)))
    assert jnp.allclose(y, y_ref, atol=1e-2, rtol=1e-2), f"max abs err {err}"

    print("KERNEL_OK")
</pallas_src>

<mosaic_0001>
module attributes {stable_mosaic.version = 11 : i64} {
  func.func @_conv_mm_kernel(%arg0: i32, %arg1: i32, %arg2: memref<1x36x64xbf16, #tpu.memory_space<vmem>>, %arg3: memref<8x36xbf16, #tpu.memory_space<vmem>>, %arg4: memref<8x1xf32, #tpu.memory_space<vmem>>, %arg5: memref<8x1xf32, #tpu.memory_space<vmem>>, %arg6: memref<1x8x64xf32, #tpu.memory_space<vmem>>) attributes {dimension_semantics = [#tpu.dimension_semantics<parallel>, #tpu.dimension_semantics<parallel>], iteration_bounds = array<i64: 2, 1>, scalar_prefetch = 0 : i64, scratch_operands = 0 : i64, tpu.core_type = #tpu.core_type<tc>, window_params = [{transform_indices = @transform_0, window_bounds = array<i64: 1, 36, 64>}, {pipeline_mode = #tpu.pipeline_mode<synchronous>, transform_indices = @transform_1, window_bounds = array<i64: 8, 36>}, {pipeline_mode = #tpu.pipeline_mode<synchronous>, transform_indices = @transform_2, window_bounds = array<i64: 8, 1>}, {pipeline_mode = #tpu.pipeline_mode<synchronous>, transform_indices = @transform_3, window_bounds = array<i64: 8, 1>}, {transform_indices = @transform_4, window_bounds = array<i64: 1, 8, 64>}]} {
    %c0 = arith.constant 0 : index
    %c0_0 = arith.constant 0 : index
    %0 = vector.load %arg3[%c0, %c0_0] : memref<8x36xbf16, #tpu.memory_space<vmem>>, vector<8x36xbf16>
    %c0_1 = arith.constant 0 : index
    %c0_2 = arith.constant 0 : index
    %c0_3 = arith.constant 0 : index
    %1 = vector.load %arg2[%c0_1, %c0_2, %c0_3] : memref<1x36x64xbf16, #tpu.memory_space<vmem>>, vector<1x36x64xbf16>
    %2 = vector.shape_cast %1 : vector<1x36x64xbf16> to vector<36x64xbf16>
    %cst = arith.constant dense<0.000000e+00> : vector<8x64xf32>
    %3 = tpu.matmul %0, %2, %cst {dimension_numbers = #tpu.dot_dimension_numbers<[1], [0], [0], [1], [0, 0, 1, 1], [], []>} : vector<8x36xbf16>, vector<36x64xbf16>, vector<8x64xf32> -> vector<8x64xf32>
    %c0_4 = arith.constant 0 : index
    %c0_5 = arith.constant 0 : index
    %4 = vector.load %arg4[%c0_4, %c0_5] : memref<8x1xf32, #tpu.memory_space<vmem>>, vector<8x1xf32>
    %5 = vector.broadcast %4 : vector<8x1xf32> to vector<8x64xf32>
    %6 = arith.mulf %3, %5 : vector<8x64xf32>
    %c0_6 = arith.constant 0 : index
    %c0_7 = arith.constant 0 : index
    %7 = vector.load %arg5[%c0_6, %c0_7] : memref<8x1xf32, #tpu.memory_space<vmem>>, vector<8x1xf32>
    %8 = vector.broadcast %7 : vector<8x1xf32> to vector<8x64xf32>
    %9 = arith.addf %6, %8 : vector<8x64xf32>
    %cst_8 = arith.constant 0.000000e+00 : f32
    %10 = vector.broadcast %cst_8 : f32 to vector<8x64xf32>
    %11 = arith.maximumf %9, %10 : vector<8x64xf32>
    %c0_9 = arith.constant 0 : index
    %c0_10 = arith.constant 0 : index
    %c0_11 = arith.constant 0 : index
    %12 = vector.load %arg6[%c0_9, %c0_10, %c0_11] : memref<1x8x64xf32, #tpu.memory_space<vmem>>, vector<1x8x64xf32>
    %13 = vector.shape_cast %12 : vector<1x8x64xf32> to vector<8x64xf32>
    %14 = vector.shape_cast %11 : vector<8x64xf32> to vector<1x8x64xf32>
    tpu.vector_store %arg6[%c0_9, %c0_10, %c0_11], %14 {strides = array<i32>} : memref<1x8x64xf32, #tpu.memory_space<vmem>>, vector<1x8x64xf32>,
    return
  }
  func.func @transform_0(%arg0: i32, %arg1: i32) -> (i32, i32, i32) {
    %c0_i32 = arith.constant 0 : i32
    %c0_i32_0 = arith.constant 0 : i32
    return %arg0, %c0_i32, %arg1 : i32, i32, i32
  }
  func.func @transform_1(%arg0: i32, %arg1: i32) -> (i32, i32) {
    %c0_i32 = arith.constant 0 : i32
    %c0_i32_0 = arith.constant 0 : i32
    %c0_i32_1 = arith.constant 0 : i32
    return %c0_i32, %c0_i32_0 : i32, i32
  }
  func.func @transform_2(%arg0: i32, %arg1: i32) -> (i32, i32) {
    %c0_i32 = arith.constant 0 : i32
    %c0_i32_0 = arith.constant 0 : i32
    %c0_i32_1 = arith.constant 0 : i32
    return %c0_i32, %c0_i32_0 : i32, i32
  }
  func.func @transform_3(%arg0: i32, %arg1: i32) -> (i32, i32) {
    %c0_i32 = arith.constant 0 : i32
    %c0_i32_0 = arith.constant 0 : i32
    %c0_i32_1 = arith.constant 0 : i32
    return %c0_i32, %c0_i32_0 : i32, i32
  }
  func.func @transform_4(%arg0: i32, %arg1: i32) -> (i32, i32, i32) {
    %c0_i32 = arith.constant 0 : i32
    %c0_i32_0 = arith.constant 0 : i32
    return %arg0, %c0_i32, %arg1 : i32, i32, i32
  }
}

module attributes {stable_mosaic.version = 11 : i64} {
  func.func @_conv_mm_kernel(%arg0: i32, %arg1: i32, %arg2: memref<1x72x64xbf16, #tpu.memory_space<vmem>>, %arg3: memref<8x72xbf16, #tpu.memory_space<vmem>>, %arg4: memref<8x1xf32, #tpu.memory_space<vmem>>, %arg5: memref<8x1xf32, #tpu.memory_space<vmem>>, %arg6: memref<1x8x64xf32, #tpu.memory_space<vmem>>) attributes {dimension_semantics = [#tpu.dimension_semantics<parallel>, #tpu.dimension_semantics<parallel>], iteration_bounds = array<i64: 2, 1>, scalar_prefetch = 0 : i64, scratch_operands = 0 : i64, tpu.core_type = #tpu.core_type<tc>, window_params = [{transform_indices = @transform_0, window_bounds = array<i64: 1, 72, 64>}, {pipeline_mode = #tpu.pipeline_mode<synchronous>, transform_indices = @transform_1, window_bounds = array<i64: 8, 72>}, {pipeline_mode = #tpu.pipeline_mode<synchronous>, transform_indices = @transform_2, window_bounds = array<i64: 8, 1>}, {pipeline_mode = #tpu.pipeline_mode<synchronous>, transform_indices = @transform_3, window_bounds = array<i64: 8, 1>}, {transform_indices = @transform_4, window_bounds = array<i64: 1, 8, 64>}]} {
    %c0 = arith.constant 0 : index
    %c0_0 = arith.constant 0 : index
    %0 = vector.load %arg3[%c0, %c0_0] : memref<8x72xbf16, #tpu.memory_space<vmem>>, vector<8x72xbf16>
    %c0_1 = arith.constant 0 : index
    %c0_2 = arith.constant 0 : index
    %c0_3 = arith.constant 0 : index
    %1 = vector.load %arg2[%c0_1, %c0_2, %c0_3] : memref<1x72x64xbf16, #tpu.memory_space<vmem>>, vector<1x72x64xbf16>
    %2 = vector.shape_cast %1 : vector<1x72x64xbf16> to vector<72x64xbf16>
    %cst = arith.constant dense<0.000000e+00> : vector<8x64xf32>
    %3 = tpu.matmul %0, %2, %cst {dimension_numbers = #tpu.dot_dimension_numbers<[1], [0], [0], [1], [0, 0, 1, 1], [], []>} : vector<8x72xbf16>, vector<72x64xbf16>, vector<8x64xf32> -> vector<8x64xf32>
    %c0_4 = arith.constant 0 : index
    %c0_5 = arith.constant 0 : index
    %4 = vector.load %arg4[%c0_4, %c0_5] : memref<8x1xf32, #tpu.memory_space<vmem>>, vector<8x1xf32>
    %5 = vector.broadcast %4 : vector<8x1xf32> to vector<8x64xf32>
    %6 = arith.mulf %3, %5 : vector<8x64xf32>
    %c0_6 = arith.constant 0 : index
    %c0_7 = arith.constant 0 : index
    %7 = vector.load %arg5[%c0_6, %c0_7] : memref<8x1xf32, #tpu.memory_space<vmem>>, vector<8x1xf32>
    %8 = vector.broadcast %7 : vector<8x1xf32> to vector<8x64xf32>
    %9 = arith.addf %6, %8 : vector<8x64xf32>
    %cst_8 = arith.constant 0.000000e+00 : f32
    %10 = vector.broadcast %cst_8 : f32 to vector<8x64xf32>
    %11 = arith.maximumf %9, %10 : vector<8x64xf32>
    %c0_9 = arith.constant 0 : index
    %c0_10 = arith.constant 0 : index
    %c0_11 = arith.constant 0 : index
    %12 = vector.load %arg6[%c0_9, %c0_10, %c0_11] : memref<1x8x64xf32, #tpu.memory_space<vmem>>, vector<1x8x64xf32>
    %13 = vector.shape_cast %12 : vector<1x8x64xf32> to vector<8x64xf32>
    %14 = vector.shape_cast %11 : vector<8x64xf32> to vector<1x8x64xf32>
    tpu.vector_store %arg6[%c0_9, %c0_10, %c0_11], %14 {strides = array<i32>} : memref<1x8x64xf32, #tpu.memory_space<vmem>>, vector<1x8x64xf32>,
    return
  }
  func.func @transform_0(%arg0: i32, %arg1: i32) -> (i32, i32, i32) {
    %c0_i32 = arith.constant 0 : i32
    %c0_i32_0 = arith.constant 0 : i32
    return %arg0, %c0_i32, %arg1 : i32, i32, i32
  }
  func.func @transform_1(%arg0: i32, %arg1: i32) -> (i32, i32) {
    %c0_i32 = arith.constant 0 : i32
    %c0_i32_0 = arith.constant 0 : i32
    %c0_i32_1 = arith.constant 0 : i32
    return %c0_i32, %c0_i32_0 : i32, i32
  }
  func.func @transform_2(%arg0: i32, %arg1: i32) -> (i32, i32) {
    %c0_i32 = arith.constant 0 : i32
    %c0_i32_0 = arith.constant 0 : i32
    %c0_i32_1 = arith.constant 0 : i32
    return %c0_i32, %c0_i32_0 : i32, i32
  }
  func.func @transform_3(%arg0: i32, %arg1: i32) -> (i32, i32) {
    %c0_i32 = arith.constant 0 : i32
    %c0_i32_0 = arith.constant 0 : i32
    %c0_i32_1 = arith.constant 0 : i32
    return %c0_i32, %c0_i32_0 : i32, i32
  }
  func.func @transform_4(%arg0: i32, %arg1: i32) -> (i32, i32, i32) {
    %c0_i32 = arith.constant 0 : i32
    %c0_i32_0 = arith.constant 0 : i32
    return %arg0, %c0_i32, %arg1 : i32, i32, i32
  }
}

module attributes {stable_mosaic.version = 11 : i64} {
  func.func @_conv_mm_kernel(%arg0: i32, %arg1: i32, %arg2: memref<1x72x64xbf16, #tpu.memory_space<vmem>>, %arg3: memref<8x72xbf16, #tpu.memory_space<vmem>>, %arg4: memref<8x1xf32, #tpu.memory_space<vmem>>, %arg5: memref<8x1xf32, #tpu.memory_space<vmem>>, %arg6: memref<1x8x64xf32, #tpu.memory_space<vmem>>, %arg7: memref<1x8x64xf32, #tpu.memory_space<vmem>>) attributes {dimension_semantics = [#tpu.dimension_semantics<parallel>, #tpu.dimension_semantics<parallel>], iteration_bounds = array<i64: 2, 1>, scalar_prefetch = 0 : i64, scratch_operands = 0 : i64, tpu.core_type = #tpu.core_type<tc>, window_params = [{transform_indices = @transform_0, window_bounds = array<i64: 1, 72, 64>}, {pipeline_mode = #tpu.pipeline_mode<synchronous>, transform_indices = @transform_1, window_bounds = array<i64: 8, 72>}, {pipeline_mode = #tpu.pipeline_mode<synchronous>, transform_indices = @transform_2, window_bounds = array<i64: 8, 1>}, {pipeline_mode = #tpu.pipeline_mode<synchronous>, transform_indices = @transform_3, window_bounds = array<i64: 8, 1>}, {transform_indices = @transform_4, window_bounds = array<i64: 1, 8, 64>}, {transform_indices = @transform_5, window_bounds = array<i64: 1, 8, 64>}]} {
    %c0 = arith.constant 0 : index
    %c0_0 = arith.constant 0 : index
    %0 = vector.load %arg3[%c0, %c0_0] : memref<8x72xbf16, #tpu.memory_space<vmem>>, vector<8x72xbf16>
    %c0_1 = arith.constant 0 : index
    %c0_2 = arith.constant 0 : index
    %c0_3 = arith.constant 0 : index
    %1 = vector.load %arg2[%c0_1, %c0_2, %c0_3] : memref<1x72x64xbf16, #tpu.memory_space<vmem>>, vector<1x72x64xbf16>
    %2 = vector.shape_cast %1 : vector<1x72x64xbf16> to vector<72x64xbf16>
    %cst = arith.constant dense<0.000000e+00> : vector<8x64xf32>
    %3 = tpu.matmul %0, %2, %cst {dimension_numbers = #tpu.dot_dimension_numbers<[1], [0], [0], [1], [0, 0, 1, 1], [], []>} : vector<8x72xbf16>, vector<72x64xbf16>, vector<8x64xf32> -> vector<8x64xf32>
    %c0_4 = arith.constant 0 : index
    %c0_5 = arith.constant 0 : index
    %4 = vector.load %arg4[%c0_4, %c0_5] : memref<8x1xf32, #tpu.memory_space<vmem>>, vector<8x1xf32>
    %5 = vector.broadcast %4 : vector<8x1xf32> to vector<8x64xf32>
    %6 = arith.mulf %3, %5 : vector<8x64xf32>
    %c0_6 = arith.constant 0 : index
    %c0_7 = arith.constant 0 : index
    %7 = vector.load %arg5[%c0_6, %c0_7] : memref<8x1xf32, #tpu.memory_space<vmem>>, vector<8x1xf32>
    %8 = vector.broadcast %7 : vector<8x1xf32> to vector<8x64xf32>
    %9 = arith.addf %6, %8 : vector<8x64xf32>
    %c0_8 = arith.constant 0 : index
    %c0_9 = arith.constant 0 : index
    %c0_10 = arith.constant 0 : index
    %10 = vector.load %arg6[%c0_8, %c0_9, %c0_10] : memref<1x8x64xf32, #tpu.memory_space<vmem>>, vector<1x8x64xf32>
    %11 = vector.shape_cast %10 : vector<1x8x64xf32> to vector<8x64xf32>
    %12 = arith.addf %9, %11 : vector<8x64xf32>
    %cst_11 = arith.constant 0.000000e+00 : f32
    %13 = vector.broadcast %cst_11 : f32 to vector<8x64xf32>
    %14 = arith.maximumf %12, %13 : vector<8x64xf32>
    %c0_12 = arith.constant 0 : index
    %c0_13 = arith.constant 0 : index
    %c0_14 = arith.constant 0 : index
    %15 = vector.load %arg7[%c0_12, %c0_13, %c0_14] : memref<1x8x64xf32, #tpu.memory_space<vmem>>, vector<1x8x64xf32>
    %16 = vector.shape_cast %15 : vector<1x8x64xf32> to vector<8x64xf32>
    %17 = vector.shape_cast %14 : vector<8x64xf32> to vector<1x8x64xf32>
    tpu.vector_store %arg7[%c0_12, %c0_13, %c0_14], %17 {strides = array<i32>} : memref<1x8x64xf32, #tpu.memory_space<vmem>>, vector<1x8x64xf32>,
    return
  }
  func.func @transform_0(%arg0: i32, %arg1: i32) -> (i32, i32, i32) {
    %c0_i32 = arith.constant 0 : i32
    %c0_i32_0 = arith.constant 0 : i32
    return %arg0, %c0_i32, %arg1 : i32, i32, i32
  }
  func.func @transform_1(%arg0: i32, %arg1: i32) -> (i32, i32) {
    %c0_i32 = arith.constant 0 : i32
    %c0_i32_0 = arith.constant 0 : i32
    %c0_i32_1 = arith.constant 0 : i32
    return %c0_i32, %c0_i32_0 : i32, i32
  }
  func.func @transform_2(%arg0: i32, %arg1: i32) -> (i32, i32) {
    %c0_i32 = arith.constant 0 : i32
    %c0_i32_0 = arith.constant 0 : i32
    %c0_i32_1 = arith.constant 0 : i32
    return %c0_i32, %c0_i32_0 : i32, i32
  }
  func.func @transform_3(%arg0: i32, %arg1: i32) -> (i32, i32) {
    %c0_i32 = arith.constant 0 : i32
    %c0_i32_0 = arith.constant 0 : i32
    %c0_i32_1 = arith.constant 0 : i32
    return %c0_i32, %c0_i32_0 : i32, i32
  }
  func.func @transform_4(%arg0: i32, %arg1: i32) -> (i32, i32, i32) {
    %c0_i32 = arith.constant 0 : i32
    %c0_i32_0 = arith.constant 0 : i32
    return %arg0, %c0_i32, %arg1 : i32, i32, i32
  }
  func.func @transform_5(%arg0: i32, %arg1: i32) -> (i32, i32, i32) {
    %c0_i32 = arith.constant 0 : i32
    %c0_i32_0 = arith.constant 0 : i32
    return %arg0, %c0_i32, %arg1 : i32, i32, i32
  }
}

module attributes {stable_mosaic.version = 11 : i64} {
  func.func @_conv_mm_kernel(%arg0: i32, %arg1: i32, %arg2: memref<1x72x256xbf16, #tpu.memory_space<vmem>>, %arg3: memref<4x72xbf16, #tpu.memory_space<vmem>>, %arg4: memref<4x1xf32, #tpu.memory_space<vmem>>, %arg5: memref<4x1xf32, #tpu.memory_space<vmem>>, %arg6: memref<1x4x256xf32, #tpu.memory_space<vmem>>) attributes {dimension_semantics = [#tpu.dimension_semantics<parallel>, #tpu.dimension_semantics<parallel>], iteration_bounds = array<i64: 2, 1>, scalar_prefetch = 0 : i64, scratch_operands = 0 : i64, tpu.core_type = #tpu.core_type<tc>, window_params = [{transform_indices = @transform_0, window_bounds = array<i64: 1, 72, 256>}, {pipeline_mode = #tpu.pipeline_mode<synchronous>, transform_indices = @transform_1, window_bounds = array<i64: 4, 72>}, {pipeline_mode = #tpu.pipeline_mode<synchronous>, transform_indices = @transform_2, window_bounds = array<i64: 4, 1>}, {pipeline_mode = #tpu.pipeline_mode<synchronous>, transform_indices = @transform_3, window_bounds = array<i64: 4, 1>}, {transform_indices = @transform_4, window_bounds = array<i64: 1, 4, 256>}]} {
    %c0 = arith.constant 0 : index
    %c0_0 = arith.constant 0 : index
    %0 = vector.load %arg3[%c0, %c0_0] : memref<4x72xbf16, #tpu.memory_space<vmem>>, vector<4x72xbf16>
    %c0_1 = arith.constant 0 : index
    %c0_2 = arith.constant 0 : index
    %c0_3 = arith.constant 0 : index
    %1 = vector.load %arg2[%c0_1, %c0_2, %c0_3] : memref<1x72x256xbf16, #tpu.memory_space<vmem>>, vector<1x72x256xbf16>
    %2 = vector.shape_cast %1 : vector<1x72x256xbf16> to vector<72x256xbf16>
    %cst = arith.constant dense<0.000000e+00> : vector<4x256xf32>
    %3 = tpu.matmul %0, %2, %cst {dimension_numbers = #tpu.dot_dimension_numbers<[1], [0], [0], [1], [0, 0, 1, 1], [], []>} : vector<4x72xbf16>, vector<72x256xbf16>, vector<4x256xf32> -> vector<4x256xf32>
    %c0_4 = arith.constant 0 : index
    %c0_5 = arith.constant 0 : index
    %4 = vector.load %arg4[%c0_4, %c0_5] : memref<4x1xf32, #tpu.memory_space<vmem>>, vector<4x1xf32>
    %5 = vector.broadcast %4 : vector<4x1xf32> to vector<4x256xf32>
    %6 = arith.mulf %3, %5 : vector<4x256xf32>
    %c0_6 = arith.constant 0 : index
    %c0_7 = arith.constant 0 : index
    %7 = vector.load %arg5[%c0_6, %c0_7] : memref<4x1xf32, #tpu.memory_space<vmem>>, vector<4x1xf32>
    %8 = vector.broadcast %7 : vector<4x1xf32> to vector<4x256xf32>
    %9 = arith.addf %6, %8 : vector<4x256xf32>
    %cst_8 = arith.constant 0.000000e+00 : f32
    %10 = vector.broadcast %cst_8 : f32 to vector<4x256xf32>
    %11 = arith.maximumf %9, %10 : vector<4x256xf32>
    %c0_9 = arith.constant 0 : index
    %c0_10 = arith.constant 0 : index
    %c0_11 = arith.constant 0 : index
    %12 = vector.load %arg6[%c0_9, %c0_10, %c0_11] : memref<1x4x256xf32, #tpu.memory_space<vmem>>, vector<1x4x256xf32>
    %13 = vector.shape_cast %12 : vector<1x4x256xf32> to vector<4x256xf32>
    %14 = vector.shape_cast %11 : vector<4x256xf32> to vector<1x4x256xf32>
    tpu.vector_store %arg6[%c0_9, %c0_10, %c0_11], %14 {strides = array<i32>} : memref<1x4x256xf32, #tpu.memory_space<vmem>>, vector<1x4x256xf32>,
    return
  }
  func.func @transform_0(%arg0: i32, %arg1: i32) -> (i32, i32, i32) {
    %c0_i32 = arith.constant 0 : i32
    %c0_i32_0 = arith.constant 0 : i32
    return %arg0, %c0_i32, %arg1 : i32, i32, i32
  }
  func.func @transform_1(%arg0: i32, %arg1: i32) -> (i32, i32) {
    %c0_i32 = arith.constant 0 : i32
    %c0_i32_0 = arith.constant 0 : i32
    %c0_i32_1 = arith.constant 0 : i32
    return %c0_i32, %c0_i32_0 : i32, i32
  }
  func.func @transform_2(%arg0: i32, %arg1: i32) -> (i32, i32) {
    %c0_i32 = arith.constant 0 : i32
    %c0_i32_0 = arith.constant 0 : i32
    %c0_i32_1 = arith.constant 0 : i32
    return %c0_i32, %c0_i32_0 : i32, i32
  }
  func.func @transform_3(%arg0: i32, %arg1: i32) -> (i32, i32) {
    %c0_i32 = arith.constant 0 : i32
    %c0_i32_0 = arith.constant 0 : i32
    %c0_i32_1 = arith.constant 0 : i32
    return %c0_i32, %c0_i32_0 : i32, i32
  }
  func.func @transform_4(%arg0: i32, %arg1: i32) -> (i32, i32, i32) {
    %c0_i32 = arith.constant 0 : i32
    %c0_i32_0 = arith.constant 0 : i32
    return %arg0, %c0_i32, %arg1 : i32, i32, i32
  }
}

module attributes {stable_mosaic.version = 11 : i64} {
  func.func @_conv_mm_kernel(%arg0: i32, %arg1: i32, %arg2: memref<1x36x256xbf16, #tpu.memory_space<vmem>>, %arg3: memref<4x36xbf16, #tpu.memory_space<vmem>>, %arg4: memref<4x1xf32, #tpu.memory_space<vmem>>, %arg5: memref<4x1xf32, #tpu.memory_space<vmem>>, %arg6: memref<1x4x256xf32, #tpu.memory_space<vmem>>) attributes {dimension_semantics = [#tpu.dimension_semantics<parallel>, #tpu.dimension_semantics<parallel>], iteration_bounds = array<i64: 2, 1>, scalar_prefetch = 0 : i64, scratch_operands = 0 : i64, tpu.core_type = #tpu.core_type<tc>, window_params = [{transform_indices = @transform_0, window_bounds = array<i64: 1, 36, 256>}, {pipeline_mode = #tpu.pipeline_mode<synchronous>, transform_indices = @transform_1, window_bounds = array<i64: 4, 36>}, {pipeline_mode = #tpu.pipeline_mode<synchronous>, transform_indices = @transform_2, window_bounds = array<i64: 4, 1>}, {pipeline_mode = #tpu.pipeline_mode<synchronous>, transform_indices = @transform_3, window_bounds = array<i64: 4, 1>}, {transform_indices = @transform_4, window_bounds = array<i64: 1, 4, 256>}]} {
    %c0 = arith.constant 0 : index
    %c0_0 = arith.constant 0 : index
    %0 = vector.load %arg3[%c0, %c0_0] : memref<4x36xbf16, #tpu.memory_space<vmem>>, vector<4x36xbf16>
    %c0_1 = arith.constant 0 : index
    %c0_2 = arith.constant 0 : index
    %c0_3 = arith.constant 0 : index
    %1 = vector.load %arg2[%c0_1, %c0_2, %c0_3] : memref<1x36x256xbf16, #tpu.memory_space<vmem>>, vector<1x36x256xbf16>
    %2 = vector.shape_cast %1 : vector<1x36x256xbf16> to vector<36x256xbf16>
    %cst = arith.constant dense<0.000000e+00> : vector<4x256xf32>
    %3 = tpu.matmul %0, %2, %cst {dimension_numbers = #tpu.dot_dimension_numbers<[1], [0], [0], [1], [0, 0, 1, 1], [], []>} : vector<4x36xbf16>, vector<36x256xbf16>, vector<4x256xf32> -> vector<4x256xf32>
    %c0_4 = arith.constant 0 : index
    %c0_5 = arith.constant 0 : index
    %4 = vector.load %arg4[%c0_4, %c0_5] : memref<4x1xf32, #tpu.memory_space<vmem>>, vector<4x1xf32>
    %5 = vector.broadcast %4 : vector<4x1xf32> to vector<4x256xf32>
    %6 = arith.mulf %3, %5 : vector<4x256xf32>
    %c0_6 = arith.constant 0 : index
    %c0_7 = arith.constant 0 : index
    %7 = vector.load %arg5[%c0_6, %c0_7] : memref<4x1xf32, #tpu.memory_space<vmem>>, vector<4x1xf32>
    %8 = vector.broadcast %7 : vector<4x1xf32> to vector<4x256xf32>
    %9 = arith.addf %6, %8 : vector<4x256xf32>
    %cst_8 = arith.constant 0.000000e+00 : f32
    %10 = vector.broadcast %cst_8 : f32 to vector<4x256xf32>
    %11 = arith.maximumf %9, %10 : vector<4x256xf32>
    %c0_9 = arith.constant 0 : index
    %c0_10 = arith.constant 0 : index
    %c0_11 = arith.constant 0 : index
    %12 = vector.load %arg6[%c0_9, %c0_10, %c0_11] : memref<1x4x256xf32, #tpu.memory_space<vmem>>, vector<1x4x256xf32>
    %13 = vector.shape_cast %12 : vector<1x4x256xf32> to vector<4x256xf32>
    %14 = vector.shape_cast %11 : vector<4x256xf32> to vector<1x4x256xf32>
    tpu.vector_store %arg6[%c0_9, %c0_10, %c0_11], %14 {strides = array<i32>} : memref<1x4x256xf32, #tpu.memory_space<vmem>>, vector<1x4x256xf32>,
    return
  }
  func.func @transform_0(%arg0: i32, %arg1: i32) -> (i32, i32, i32) {
    %c0_i32 = arith.constant 0 : i32
    %c0_i32_0 = arith.constant 0 : i32
    return %arg0, %c0_i32, %arg1 : i32, i32, i32
  }
  func.func @transform_1(%arg0: i32, %arg1: i32) -> (i32, i32) {
    %c0_i32 = arith.constant 0 : i32
    %c0_i32_0 = arith.constant 0 : i32
    %c0_i32_1 = arith.constant 0 : i32
    return %c0_i32, %c0_i32_0 : i32, i32
  }
  func.func @transform_2(%arg0: i32, %arg1: i32) -> (i32, i32) {
    %c0_i32 = arith.constant 0 : i32
    %c0_i32_0 = arith.constant 0 : i32
    %c0_i32_1 = arith.constant 0 : i32
    return %c0_i32, %c0_i32_0 : i32, i32
  }
  func.func @transform_3(%arg0: i32, %arg1: i32) -> (i32, i32) {
    %c0_i32 = arith.constant 0 : i32
    %c0_i32_0 = arith.constant 0 : i32
    %c0_i32_1 = arith.constant 0 : i32
    return %c0_i32, %c0_i32_0 : i32, i32
  }
  func.func @transform_4(%arg0: i32, %arg1: i32) -> (i32, i32, i32) {
    %c0_i32 = arith.constant 0 : i32
    %c0_i32_0 = arith.constant 0 : i32
    return %arg0, %c0_i32, %arg1 : i32, i32, i32
  }
}

module attributes {stable_mosaic.version = 11 : i64} {
  func.func @_conv_mm_kernel(%arg0: i32, %arg1: i32, %arg2: memref<1x36x256xbf16, #tpu.memory_space<vmem>>, %arg3: memref<4x36xbf16, #tpu.memory_space<vmem>>, %arg4: memref<4x1xf32, #tpu.memory_space<vmem>>, %arg5: memref<4x1xf32, #tpu.memory_space<vmem>>, %arg6: memref<1x4x256xf32, #tpu.memory_space<vmem>>, %arg7: memref<1x4x256xf32, #tpu.memory_space<vmem>>) attributes {dimension_semantics = [#tpu.dimension_semantics<parallel>, #tpu.dimension_semantics<parallel>], iteration_bounds = array<i64: 2, 1>, scalar_prefetch = 0 : i64, scratch_operands = 0 : i64, tpu.core_type = #tpu.core_type<tc>, window_params = [{transform_indices = @transform_0, window_bounds = array<i64: 1, 36, 256>}, {pipeline_mode = #tpu.pipeline_mode<synchronous>, transform_indices = @transform_1, window_bounds = array<i64: 4, 36>}, {pipeline_mode = #tpu.pipeline_mode<synchronous>, transform_indices = @transform_2, window_bounds = array<i64: 4, 1>}, {pipeline_mode = #tpu.pipeline_mode<synchronous>, transform_indices = @transform_3, window_bounds = array<i64: 4, 1>}, {transform_indices = @transform_4, window_bounds = array<i64: 1, 4, 256>}, {transform_indices = @transform_5, window_bounds = array<i64: 1, 4, 256>}]} {
    %c0 = arith.constant 0 : index
    %c0_0 = arith.constant 0 : index
    %0 = vector.load %arg3[%c0, %c0_0] : memref<4x36xbf16, #tpu.memory_space<vmem>>, vector<4x36xbf16>
    %c0_1 = arith.constant 0 : index
    %c0_2 = arith.constant 0 : index
    %c0_3 = arith.constant 0 : index
    %1 = vector.load %arg2[%c0_1, %c0_2, %c0_3] : memref<1x36x256xbf16, #tpu.memory_space<vmem>>, vector<1x36x256xbf16>
    %2 = vector.shape_cast %1 : vector<1x36x256xbf16> to vector<36x256xbf16>
    %cst = arith.constant dense<0.000000e+00> : vector<4x256xf32>
    %3 = tpu.matmul %0, %2, %cst {dimension_numbers = #tpu.dot_dimension_numbers<[1], [0], [0], [1], [0, 0, 1, 1], [], []>} : vector<4x36xbf16>, vector<36x256xbf16>, vector<4x256xf32> -> vector<4x256xf32>
    %c0_4 = arith.constant 0 : index
    %c0_5 = arith.constant 0 : index
    %4 = vector.load %arg4[%c0_4, %c0_5] : memref<4x1xf32, #tpu.memory_space<vmem>>, vector<4x1xf32>
    %5 = vector.broadcast %4 : vector<4x1xf32> to vector<4x256xf32>
    %6 = arith.mulf %3, %5 : vector<4x256xf32>
    %c0_6 = arith.constant 0 : index
    %c0_7 = arith.constant 0 : index
    %7 = vector.load %arg5[%c0_6, %c0_7] : memref<4x1xf32, #tpu.memory_space<vmem>>, vector<4x1xf32>
    %8 = vector.broadcast %7 : vector<4x1xf32> to vector<4x256xf32>
    %9 = arith.addf %6, %8 : vector<4x256xf32>
    %c0_8 = arith.constant 0 : index
    %c0_9 = arith.constant 0 : index
    %c0_10 = arith.constant 0 : index
    %10 = vector.load %arg6[%c0_8, %c0_9, %c0_10] : memref<1x4x256xf32, #tpu.memory_space<vmem>>, vector<1x4x256xf32>
    %11 = vector.shape_cast %10 : vector<1x4x256xf32> to vector<4x256xf32>
    %12 = arith.addf %9, %11 : vector<4x256xf32>
    %cst_11 = arith.constant 0.000000e+00 : f32
    %13 = vector.broadcast %cst_11 : f32 to vector<4x256xf32>
    %14 = arith.maximumf %12, %13 : vector<4x256xf32>
    %c0_12 = arith.constant 0 : index
    %c0_13 = arith.constant 0 : index
    %c0_14 = arith.constant 0 : index
    %15 = vector.load %arg7[%c0_12, %c0_13, %c0_14] : memref<1x4x256xf32, #tpu.memory_space<vmem>>, vector<1x4x256xf32>
    %16 = vector.shape_cast %15 : vector<1x4x256xf32> to vector<4x256xf32>
    %17 = vector.shape_cast %14 : vector<4x256xf32> to vector<1x4x256xf32>
    tpu.vector_store %arg7[%c0_12, %c0_13, %c0_14], %17 {strides = array<i32>} : memref<1x4x256xf32, #tpu.memory_space<vmem>>, vector<1x4x256xf32>,
    return
  }
  func.func @transform_0(%arg0: i32, %arg1: i32) -> (i32, i32, i32) {
    %c0_i32 = arith.constant 0 : i32
    %c0_i32_0 = arith.constant 0 : i32
    return %arg0, %c0_i32, %arg1 : i32, i32, i32
  }
  func.func @transform_1(%arg0: i32, %arg1: i32) -> (i32, i32) {
    %c0_i32 = arith.constant 0 : i32
    %c0_i32_0 = arith.constant 0 : i32
    %c0_i32_1 = arith.constant 0 : i32
    return %c0_i32, %c0_i32_0 : i32, i32
  }
  func.func @transform_2(%arg0: i32, %arg1: i32) -> (i32, i32) {
    %c0_i32 = arith.constant 0 : i32
    %c0_i32_0 = arith.constant 0 : i32
    %c0_i32_1 = arith.constant 0 : i32
    return %c0_i32, %c0_i32_0 : i32, i32
  }
  func.func @transform_3(%arg0: i32, %arg1: i32) -> (i32, i32) {
    %c0_i32 = arith.constant 0 : i32
    %c0_i32_0 = arith.constant 0 : i32
    %c0_i32_1 = arith.constant 0 : i32
    return %c0_i32, %c0_i32_0 : i32, i32
  }
  func.func @transform_4(%arg0: i32, %arg1: i32) -> (i32, i32, i32) {
    %c0_i32 = arith.constant 0 : i32
    %c0_i32_0 = arith.constant 0 : i32
    return %arg0, %c0_i32, %arg1 : i32, i32, i32
  }
  func.func @transform_5(%arg0: i32, %arg1: i32) -> (i32, i32, i32) {
    %c0_i32 = arith.constant 0 : i32
    %c0_i32_0 = arith.constant 0 : i32
    return %arg0, %c0_i32, %arg1 : i32, i32, i32
  }
}

</mosaic_0001>

<llo_original>
// kernel: res_unet_innermost_forward.10
$region0: #{res_unet_innermost_forward.10}
  #allocation0 [shape = 'u32[]', space=smem, size = 0x4, offset = 0x4, fixed_abs, tag = 'smem constant byte address 0x4 - core index']
  #allocation1 [shape = 'u32[144,128]{1,0:T(1,128)}', space=vmem, size = 0x12000, scoped, tag = 'internal scratch']
  %s0 = inlined_call_operand.vmem [shape: bf16[2,36,64], index: 0, kind: input, shape index: {}]
  %s1 = inlined_call_operand.vmem [shape: bf16[8,36], index: 1, kind: input, shape index: {}]
  %s2 = inlined_call_operand.vmem [shape: f32[8,1], index: 2, kind: input, shape index: {}]
  %s3 = inlined_call_operand.vmem [shape: f32[8,1], index: 3, kind: input, shape index: {}]
  %s4 = inlined_call_operand.vmem [shape: f32[2,8,64], index: 4, kind: output, shape index: {}]
  %s5 = sld [smem:[#allocation0]]
  $region49: #{res_unet_innermost_forward.10} parent=0
    _
  %s7 = ssub.s32 1, %s5
  %s8 = scalar_select 0, %s7, %s5
  loop: start=0, step=1, limit=4
  $region2: #{res_unet_innermost_forward.10} parent=0 // loop_pre_header
    _
  $region3: #{res_unet_innermost_forward.10} parent=0 // loop_header
    %s10 = sphi 0, %s14
    %p11 = scmp.ge.s32.totalorder %s10, 4
    %s17 = sphi 0, %s29
    %s18 = sphi 0, %s25
    %s19 = sphi 0, %s17
    %s20 = sphi 0, %s18
    %s21 = sphi 0, %s19
    %s22 = sphi 0, %s20
    %s34 = sphi 0, %s36
    %s37 = sphi 0, %s34
    %s38 = sphi 0, %s37
    %s54 = sphi 0, %s38
    %s58 = sphi 0, %s58
    %s60 = sphi 0, %s58
    %s61 = sphi 0, %s60
    %s75 = sphi 0, %s61
    %s79 = sphi 0, %s79
    %s81 = sphi 0, %s79
    %s82 = sphi 0, %s81
    %s96 = sphi 0, %s82
    %s100 = sphi 0, %s100
    %s102 = sphi 0, %s100
    %s103 = sphi 0, %s102
    %s117 = sphi 0, %s103
    %s125 = sphi 0, %s127
    %s128 = sphi 0, %s125
    %s129 = sphi 0, %s128
    %s145 = sphi 0, %s129
  $region4: #{res_unet_innermost_forward.10} parent=0 // loop_header_branch
    %13 = sbr.rel (%p11) target = $region8
  $region5: #{res_unet_innermost_forward.10} parent=0 // loop_body
    %s15 = ssub.s32 %s10, 1
    %s16 = ssub.s32 %s10, 2
    %s23 = sadd.s32 1, %s18
    %p24 = scmp.ge.s32.totalorder %s23, 1
    %s25 = scalar_select %p24, 0, %s23
    %s26 = sadd.s32 1, %s17
    %s27 = scalar_select %p24, %s26, %s17
    %p28 = scmp.ge.s32.totalorder %s27, 2
    %s29 = scalar_select %p28, 0, %s27
    %s30 = ssub.s32 %s17, %s29
    %s31 = ssub.s32 %s18, %s25
    %s32 = sor.u32 %s30, %s31
    %p33 = scmp.eq.s32.totalorder %s32, 0
    %s35 = sadd.s32 %s34, 1
    %s36 = scalar_select %p33, %s34, %s35
    %p39 = pneg %p33
    %p40 = scmp.eq.s32.totalorder %s10, 1
    %p41 = por %p39, %p40
    %p42 = scmp.ne.s32.totalorder %s34, %s37
    %p43 = scmp.eq.s32.totalorder %s10, 0
    %p44 = por %p42, %p43
    %p45 = scmp.ne.s32.totalorder %s34, %s37
    %p46 = scmp.eq.s32.totalorder %s15, 1
    %p47 = por %p45, %p46
    %p48 = scmp.ne.s32.totalorder %s37, %s38
    %p49 = scmp.eq.s32.totalorder %s15, 0
    %p50 = por %p48, %p49
    %p51 = scmp.ne.s32.totalorder %s37, %s38
    %p52 = scmp.eq.s32.totalorder %s16, 1
    %p53 = por %p51, %p52
    %p55 = scmp.ne.s32.totalorder %s38, %s54
    %p56 = scmp.eq.s32.totalorder %s16, 0
    %p57 = por %p55, %p56
    %s59 = sadd.s32 %s58, 1
    %p62 = scmp.eq.s32.totalorder %s10, 1
    %p63 = scmp.ne.s32.totalorder %s58, %s60
    %p64 = scmp.eq.s32.totalorder %s10, 0
    %p65 = por %p63, %p64
    %p66 = scmp.ne.s32.totalorder %s58, %s60
    %p67 = scmp.eq.s32.totalorder %s15, 1
    %p68 = por %p66, %p67
    %p69 = scmp.ne.s32.totalorder %s60, %s61
    %p70 = scmp.eq.s32.totalorder %s15, 0
    %p71 = por %p69, %p70
    %p72 = scmp.ne.s32.totalorder %s60, %s61
    %p73 = scmp.eq.s32.totalorder %s16, 1
    %p74 = por %p72, %p73
    %p76 = scmp.ne.s32.totalorder %s61, %s75
    %p77 = scmp.eq.s32.totalorder %s16, 0
    %p78 = por %p76, %p77
    %s80 = sadd.s32 %s79, 1
    %p83 = scmp.eq.s32.totalorder %s10, 1
    %p84 = scmp.ne.s32.totalorder %s79, %s81
    %p85 = scmp.eq.s32.totalorder %s10, 0
    %p86 = por %p84, %p85
    %p87 = scmp.ne.s32.totalorder %s79, %s81
    %p88 = scmp.eq.s32.totalorder %s15, 1
    %p89 = por %p87, %p88
    %p90 = scmp.ne.s32.totalorder %s81, %s82
    %p91 = scmp.eq.s32.totalorder %s15, 0
    %p92 = por %p90, %p91
    %p93 = scmp.ne.s32.totalorder %s81, %s82
    %p94 = scmp.eq.s32.totalorder %s16, 1
    %p95 = por %p93, %p94
    %p97 = scmp.ne.s32.totalorder %s82, %s96
    %p98 = scmp.eq.s32.totalorder %s16, 0
    %p99 = por %p97, %p98
    %s101 = sadd.s32 %s100, 1
    %p104 = scmp.eq.s32.totalorder %s10, 1
    %p105 = scmp.ne.s32.totalorder %s100, %s102
    %p106 = scmp.eq.s32.totalorder %s10, 0
    %p107 = por %p105, %p106
    %p108 = scmp.ne.s32.totalorder %s100, %s102
    %p109 = scmp.eq.s32.totalorder %s15, 1
    %p110 = por %p108, %p109
    %p111 = scmp.ne.s32.totalorder %s102, %s103
    %p112 = scmp.eq.s32.totalorder %s15, 0
    %p113 = por %p111, %p112
    %p114 = scmp.ne.s32.totalorder %s102, %s103
    %p115 = scmp.eq.s32.totalorder %s16, 1
    %p116 = por %p114, %p115
    %p118 = scmp.ne.s32.totalorder %s103, %s117
    %p119 = scmp.eq.s32.totalorder %s16, 0
    %p120 = por %p118, %p119
    %s121 = ssub.s32 %s17, %s29
    %s122 = ssub.s32 %s18, %s25
    %s123 = sor.u32 %s121, %s122
    %p124 = scmp.eq.s32.totalorder %s123, 0
    %s126 = sadd.s32 %s125, 1
    %s127 = scalar_select %p124, %s125, %s126
    %p130 = pneg %p124
    %p131 = scmp.eq.s32.totalorder %s10, 1
    %p132 = por %p130, %p131
    %p133 = scmp.ne.s32.totalorder %s125, %s128
    %p134 = scmp.eq.s32.totalorder %s10, 0
    %p135 = por %p133, %p134
    %p136 = scmp.ne.s32.totalorder %s125, %s128
    %p137 = scmp.eq.s32.totalorder %s15, 1
    %p138 = por %p136, %p137
    %p139 = scmp.ne.s32.totalorder %s128, %s129
    %p140 = scmp.eq.s32.totalorder %s15, 0
    %p141 = por %p139, %p140
    %p142 = scmp.ne.s32.totalorder %s128, %s129
    %p143 = scmp.eq.s32.totalorder %s16, 1
    %p144 = por %p142, %p143
    %p146 = scmp.ne.s32.totalorder %s129, %s145
    %p147 = scmp.eq.s32.totalorder %s16, 0
    %p148 = por %p146, %p147
    %p149 = scmp.le.s32.totalorder 1, %s10
    %p150 = scmp.lt.s32.totalorder %s10, 3
    %p151 = pnand %p149, %p150
    %p152 = pneg %p151
    // Predicated region
    $region9: #{res_unet_innermost_forward.10} parent=5 // pred_check
      _
    $region10: #{res_unet_innermost_forward.10} parent=5 // pred_check_branch
      %154 = sbr.rel (%p151) target = $region12
    $region11: #{res_unet_innermost_forward.10} parent=5 // pred_region
      %s155 = ssub.s32 %s10, 1
      // Predicated region
      $region13: #{res_unet_innermost_forward.10} parent=11 // pred_check
        %p156 = pneg %p71
      $region14: #{res_unet_innermost_forward.10} parent=11 // pred_check_branch
        %158 = sbr.rel (%p156) target = $region16
      $region15: #{res_unet_innermost_forward.10} parent=11 // pred_region
        _
      $region16: #{res_unet_innermost_forward.10} parent=11 // pred_fallthru
        _
      // Predicated region
      $region17: #{res_unet_innermost_forward.10} parent=11 // pred_check
        %p159 = pneg %p92
      $region18: #{res_unet_innermost_forward.10} parent=11 // pred_check_branch
        %161 = sbr.rel (%p159) target = $region20
      $region19: #{res_unet_innermost_forward.10} parent=11 // pred_region
        _
      $region20: #{res_unet_innermost_forward.10} parent=11 // pred_fallthru
        _
      // Predicated region
      $region21: #{res_unet_innermost_forward.10} parent=11 // pred_check
        %p162 = pneg %p113
      $region22: #{res_unet_innermost_forward.10} parent=11 // pred_check_branch
        %164 = sbr.rel (%p162) target = $region24
      $region23: #{res_unet_innermost_forward.10} parent=11 // pred_region
        _
      $region24: #{res_unet_innermost_forward.10} parent=11 // pred_fallthru
        _
    $region12: #{res_unet_innermost_forward.10} parent=5 // pred_fallthru
      _
    %p165 = scmp.lt.s32.totalorder %s10, 2
    // Predicated region
    $region25: #{res_unet_innermost_forward.10} parent=5 // pred_check
      %p166 = pneg %p165
    $region26: #{res_unet_innermost_forward.10} parent=5 // pred_check_branch
      %168 = sbr.rel (%p166) target = $region28
    $region27: #{res_unet_innermost_forward.10} parent=5 // pred_region
      // Predicated region
      $region29: #{res_unet_innermost_forward.10} parent=27 // pred_check
        %p169 = pneg %p44
      $region30: #{res_unet_innermost_forward.10} parent=27 // pred_check_branch
        %171 = sbr.rel (%p169) target = $region32
      $region31: #{res_unet_innermost_forward.10} parent=27 // pred_region
        %p172 = scmp.lt.s32.totalorder %s17, 1
        %s173 = scalar_select %p172, %s17, 1
        %p174 = scmp.lt.s32.totalorder %s18, 0
        %s175 = scalar_select %p174, %s18, 0
        %s176 = smul.addr %s173, 5
        %s177 = sadd.s32 %s175, %s176
        %s178 = smul.addr %s177, 4
        %s179 = scalar_lea.vmem %s0, %s178
      $region32: #{res_unet_innermost_forward.10} parent=27 // pred_fallthru
        _
    $region28: #{res_unet_innermost_forward.10} parent=5 // pred_fallthru
      _
    %p180 = scmp.le.s32.totalorder 1, %s10
    %p181 = scmp.lt.s32.totalorder %s10, 3
    %p182 = pnand %p180, %p181
    %p183 = pneg %p182
    // Predicated region
    $region33: #{res_unet_innermost_forward.10} parent=5 // pred_check
      _
    $region34: #{res_unet_innermost_forward.10} parent=5 // pred_check_branch
      %185 = sbr.rel (%p182) target = $region36
    $region35: #{res_unet_innermost_forward.10} parent=5 // pred_region
      %s186 = ssub.s32 %s10, 1
      %p187 = scmp.lt.s32.totalorder %s19, 1
      %s188 = scalar_select %p187, %s19, 1
      %p189 = scmp.lt.s32.totalorder %s20, 0
      %s190 = scalar_select %p189, %s20, 0
      %s191 = smul.addr %s188, 5
      %s192 = sadd.s32 %s190, %s191
      %s193 = smul.addr %s192, 4
      %s194 = scalar_lea.vmem %s0, %s193
      %p195 = pneg %p50
      %p196 = pneg %p47
      %p197 = pneg %p71
      %p198 = pneg %p68
      %p199 = pneg %p92
      %p200 = pneg %p89
      %p201 = pneg %p113
      %p202 = pneg %p110
      %p203 = pneg %p141
      %p204 = pneg %p138
      %p205 = scmp.lt.s32.totalorder %s19, 1
      %s206 = scalar_select %p205, %s19, 1
      %p207 = scmp.lt.s32.totalorder %s20, 0
      %s208 = scalar_select %p207, %s20, 0
      %s209 = sadd.s32 %s208, %s206
      %s210 = smul.addr %s209, 8
      %s211 = scalar_lea.vmem %s4, %s210
      %p212 = scmp.lt.s32.totalorder %s19, 1
      %s213 = scalar_select %p212, %s19, 1
      %p214 = scmp.lt.s32.totalorder %s20, 0
      %s215 = scalar_select %p214, %s20, 0
      %s216 = smul.addr %s213, 5
      %s217 = sadd.s32 %s215, %s216
      %s218 = smul.addr %s217, 4
      %s219 = scalar_lea.vmem %s0, %s218
      %p220 = scmp.lt.s32.totalorder %s19, 1
      %s221 = scalar_select %p220, %s19, 1
      %p222 = scmp.lt.s32.totalorder %s20, 0
      %s223 = scalar_select %p222, %s20, 0
      %s224 = sadd.s32 %s223, %s221
      %s225 = smul.addr %s224, 8
      %s226 = scalar_lea.vmem %s4, %s225
      %v228 = vld [vmem:[%s1] sm:$0xf]
      %v229 = vld [vmem:[%s219] sm:$0xf]
      %v230 = vld [vmem:[%s219 + $0x4] sm:$0xf]
      %v231 = vld [vmem:[%s219 + $0x8] sm:$0xf]
      %v232 = vld [vmem:[%s219 + $0xc] sm:$0xf]
      %v233 = vld [vmem:[%s219 + $0x10] sm:$0x3]
      %v239 = vunpack.c.l.b16 %v229
      %v240 = vunpack.c.l.b16 %v230
      %v241 = vunpack.c.l.b16 %v231
      %v242 = vunpack.c.l.b16 %v232
      %v243 = vunpack.c.l.b16 %v233
      %v244 = vpack.c.b16 %v240, %v239
      %v245 = vpack.c.b16 %v242, %v241
      %v246 = vpack.c.b16 %v243, %v243
      %vm249 = vcmask 293888
      %v251 = vsel %vm249, %v228, 0
      %vm253 = vcmask 1041408
      %v255 = vsel %vm253, %v246, 0
      %257 = vmatprep.subr.bf16.mxu0 0
      %258 = vmatpush1.bf16.msra.mxu0 %v244
      %259 = vmatprep.subr.bf16.mxu0 0
      %260 = vmatpush1.bf16.msra.mxu0 %v245
      %261 = vmatprep.subr.bf16.mxu0 0
      %262 = vmatpush1.bf16.msra.mxu0 %v255
      %263 = vmatprep.subr.bf16.mxu0 0
      %264 = vmatpush1.bf16.msra.mxu0 0
      %265 = vmatprep.subr.bf16.mxu0 0
      %266 = vmatpush1.bf16.msra.mxu0 0
      %267 = vmatprep.subr.bf16.mxu0 0
      %268 = vmatpush1.bf16.msra.mxu0 0
      %269 = vmatprep.subr.bf16.mxu0 0
      %270 = vmatpush1.bf16.msra.mxu0 0
      %271 = vmatprep.subr.bf16.mxu0 0
      %272 = vmatpush1.bf16.msra.mxu0 0
      %273 = vmatprep.subr.bf16.mxu0 0
      %274 = vmatpush1.bf16.msra.mxu0 0
      %275 = vmatprep.subr.bf16.mxu0 0
      %276 = vmatpush1.bf16.msra.mxu0 0
      %277 = vmatprep.subr.bf16.mxu0 0
      %278 = vmatpush1.bf16.msra.mxu0 0
      %279 = vmatprep.subr.bf16.mxu0 0
      %280 = vmatpush1.bf16.msra.mxu0 0
      %281 = vmatprep.subr.bf16.mxu0 0
      %282 = vmatpush1.bf16.msra.mxu0 0
      %283 = vmatprep.subr.bf16.mxu0 0
      %284 = vmatpush1.bf16.msra.mxu0 0
      %285 = vmatprep.subr.bf16.mxu0 0
      %286 = vmatpush1.bf16.msra.mxu0 0
      %287 = vmatprep.subr.bf16.mxu0 0
      %288 = vmatpush1.bf16.msra.mxu0 0
      %289 = vmatprep.mubr.bf16.mxu0 0
      %290 = vmatmul.mubr.bf16.gmra.mrb[0].mxu0 %v251
      %v291 = vpop.f32.mrb[0].mxu0
      %v292 = vadd.f32 0.0, %v291
      %v293 = vpop.f32.mrb[0].mxu0
      %v294 = vpop.f32.mrb[0].mxu0
      %v295 = vpop.f32.mrb[0].mxu0
      %296 = vdwg.mxu0
      %v297 = vld [vmem:[%s2] sm:$0xff]
      %299 = vset.pattern.permute.xlu0 0
      %300 = vperm.xlu0 %299, %v297
      %v301 = vpop.permute.xlu0 %300
      %v303 = vmul.f32 %v292, %v301
      %v304 = vld [vmem:[%s3] sm:$0xff]
      %306 = vset.pattern.permute.xlu0 0
      %307 = vperm.xlu0 %306, %v304
      %v308 = vpop.permute.xlu0 %307
      %v310 = vadd.f32 %v303, %v308
      %v311 = vmax.f32 %v310, 0.0
      %vm312 = vcmask 523264
      %313 = vst.msk [vmem:[%s226] sm:$0xff] %vm312, %v311
      %p314 = scmp.lt.s32.totalorder %s19, 1
      %s315 = scalar_select %p314, %s19, 1
      %p316 = scmp.lt.s32.totalorder %s20, 0
      %s317 = scalar_select %p316, %s20, 0
      %s318 = sadd.s32 %s317, %s315
      %s319 = smul.addr %s318, 8
      %s320 = scalar_lea.vmem %s4, %s319
      // Predicated region
      $region37: #{res_unet_innermost_forward.10} parent=35 // pred_check
        %p321 = pneg %p138
      $region38: #{res_unet_innermost_forward.10} parent=35 // pred_check_branch
        %323 = sbr.rel (%p321) target = $region40
      $region39: #{res_unet_innermost_forward.10} parent=35 // pred_region
        _
      $region40: #{res_unet_innermost_forward.10} parent=35 // pred_fallthru
        _
    $region36: #{res_unet_innermost_forward.10} parent=5 // pred_fallthru
      _
    %p324 = scmp.le.s32.totalorder 2, %s10
    // Predicated region
    $region41: #{res_unet_innermost_forward.10} parent=5 // pred_check
      %p325 = pneg %p324
    $region42: #{res_unet_innermost_forward.10} parent=5 // pred_check_branch
      %327 = sbr.rel (%p325) target = $region44
    $region43: #{res_unet_innermost_forward.10} parent=5 // pred_region
      %s328 = ssub.s32 %s10, 2
      // Predicated region
      $region45: #{res_unet_innermost_forward.10} parent=43 // pred_check
        %p329 = pneg %p144
      $region46: #{res_unet_innermost_forward.10} parent=43 // pred_check_branch
        %331 = sbr.rel (%p329) target = $region48
      $region47: #{res_unet_innermost_forward.10} parent=43 // pred_region
        %p332 = scmp.lt.s32.totalorder %s21, 1
        %s333 = scalar_select %p332, %s21, 1
        %p334 = scmp.lt.s32.totalorder %s22, 0
        %s335 = scalar_select %p334, %s22, 0
        %s336 = sadd.s32 %s335, %s333
        %s337 = smul.addr %s336, 8
        %s338 = scalar_lea.vmem %s4, %s337
      $region48: #{res_unet_innermost_forward.10} parent=43 // pred_fallthru
        _
    $region44: #{res_unet_innermost_forward.10} parent=5 // pred_fallthru
      _
  $region6: #{res_unet_innermost_forward.10} parent=0 // loop_footer
    %s14 = sadd.s32 1, %s10
  $region7: #{res_unet_innermost_forward.10} parent=0 // loop_footer_branch
    %9 = sbr.rel target = $region3
  $region8: #{res_unet_innermost_forward.10} parent=0 // loop_exit
    _

// kernel: res_unet_innermost_forward.11
$region0: #{res_unet_innermost_forward.11}
  #allocation0 [shape = 'u32[]', space=smem, size = 0x4, offset = 0x4, fixed_abs, tag = 'smem constant byte address 0x4 - core index']
  #allocation1 [shape = 'u32[144,128]{1,0:T(1,128)}', space=vmem, size = 0x12000, scoped, tag = 'internal scratch']
  %s0 = inlined_call_operand.vmem [shape: bf16[2,72,64], index: 0, kind: input, shape index: {}]
  %s1 = inlined_call_operand.vmem [shape: bf16[8,72], index: 1, kind: input, shape index: {}]
  %s2 = inlined_call_operand.vmem [shape: f32[8,1], index: 2, kind: input, shape index: {}]
  %s3 = inlined_call_operand.vmem [shape: f32[8,1], index: 3, kind: input, shape index: {}]
  %s4 = inlined_call_operand.vmem [shape: f32[2,8,64], index: 4, kind: output, shape index: {}]
  %s5 = sld [smem:[#allocation0]]
  $region49: #{res_unet_innermost_forward.11} parent=0
    _
  %s7 = ssub.s32 1, %s5
  %s8 = scalar_select 0, %s7, %s5
  loop: start=0, step=1, limit=4
  $region2: #{res_unet_innermost_forward.11} parent=0 // loop_pre_header
    _
  $region3: #{res_unet_innermost_forward.11} parent=0 // loop_header
    %s10 = sphi 0, %s14
    %p11 = scmp.ge.s32.totalorder %s10, 4
    %s17 = sphi 0, %s29
    %s18 = sphi 0, %s25
    %s19 = sphi 0, %s17
    %s20 = sphi 0, %s18
    %s21 = sphi 0, %s19
    %s22 = sphi 0, %s20
    %s34 = sphi 0, %s36
    %s37 = sphi 0, %s34
    %s38 = sphi 0, %s37
    %s54 = sphi 0, %s38
    %s58 = sphi 0, %s58
    %s60 = sphi 0, %s58
    %s61 = sphi 0, %s60
    %s75 = sphi 0, %s61
    %s79 = sphi 0, %s79
    %s81 = sphi 0, %s79
    %s82 = sphi 0, %s81
    %s96 = sphi 0, %s82
    %s100 = sphi 0, %s100
    %s102 = sphi 0, %s100
    %s103 = sphi 0, %s102
    %s117 = sphi 0, %s103
    %s125 = sphi 0, %s127
    %s128 = sphi 0, %s125
    %s129 = sphi 0, %s128
    %s145 = sphi 0, %s129
  $region4: #{res_unet_innermost_forward.11} parent=0 // loop_header_branch
    %13 = sbr.rel (%p11) target = $region8
  $region5: #{res_unet_innermost_forward.11} parent=0 // loop_body
    %s15 = ssub.s32 %s10, 1
    %s16 = ssub.s32 %s10, 2
    %s23 = sadd.s32 1, %s18
    %p24 = scmp.ge.s32.totalorder %s23, 1
    %s25 = scalar_select %p24, 0, %s23
    %s26 = sadd.s32 1, %s17
    %s27 = scalar_select %p24, %s26, %s17
    %p28 = scmp.ge.s32.totalorder %s27, 2
    %s29 = scalar_select %p28, 0, %s27
    %s30 = ssub.s32 %s17, %s29
    %s31 = ssub.s32 %s18, %s25
    %s32 = sor.u32 %s30, %s31
    %p33 = scmp.eq.s32.totalorder %s32, 0
    %s35 = sadd.s32 %s34, 1
    %s36 = scalar_select %p33, %s34, %s35
    %p39 = pneg %p33
    %p40 = scmp.eq.s32.totalorder %s10, 1
    %p41 = por %p39, %p40
    %p42 = scmp.ne.s32.totalorder %s34, %s37
    %p43 = scmp.eq.s32.totalorder %s10, 0
    %p44 = por %p42, %p43
    %p45 = scmp.ne.s32.totalorder %s34, %s37
    %p46 = scmp.eq.s32.totalorder %s15, 1
    %p47 = por %p45, %p46
    %p48 = scmp.ne.s32.totalorder %s37, %s38
    %p49 = scmp.eq.s32.totalorder %s15, 0
    %p50 = por %p48, %p49
    %p51 = scmp.ne.s32.totalorder %s37, %s38
    %p52 = scmp.eq.s32.totalorder %s16, 1
    %p53 = por %p51, %p52
    %p55 = scmp.ne.s32.totalorder %s38, %s54
    %p56 = scmp.eq.s32.totalorder %s16, 0
    %p57 = por %p55, %p56
    %s59 = sadd.s32 %s58, 1
    %p62 = scmp.eq.s32.totalorder %s10, 1
    %p63 = scmp.ne.s32.totalorder %s58, %s60
    %p64 = scmp.eq.s32.totalorder %s10, 0
    %p65 = por %p63, %p64
    %p66 = scmp.ne.s32.totalorder %s58, %s60
    %p67 = scmp.eq.s32.totalorder %s15, 1
    %p68 = por %p66, %p67
    %p69 = scmp.ne.s32.totalorder %s60, %s61
    %p70 = scmp.eq.s32.totalorder %s15, 0
    %p71 = por %p69, %p70
    %p72 = scmp.ne.s32.totalorder %s60, %s61
    %p73 = scmp.eq.s32.totalorder %s16, 1
    %p74 = por %p72, %p73
    %p76 = scmp.ne.s32.totalorder %s61, %s75
    %p77 = scmp.eq.s32.totalorder %s16, 0
    %p78 = por %p76, %p77
    %s80 = sadd.s32 %s79, 1
    %p83 = scmp.eq.s32.totalorder %s10, 1
    %p84 = scmp.ne.s32.totalorder %s79, %s81
    %p85 = scmp.eq.s32.totalorder %s10, 0
    %p86 = por %p84, %p85
    %p87 = scmp.ne.s32.totalorder %s79, %s81
    %p88 = scmp.eq.s32.totalorder %s15, 1
    %p89 = por %p87, %p88
    %p90 = scmp.ne.s32.totalorder %s81, %s82
    %p91 = scmp.eq.s32.totalorder %s15, 0
    %p92 = por %p90, %p91
    %p93 = scmp.ne.s32.totalorder %s81, %s82
    %p94 = scmp.eq.s32.totalorder %s16, 1
    %p95 = por %p93, %p94
    %p97 = scmp.ne.s32.totalorder %s82, %s96
    %p98 = scmp.eq.s32.totalorder %s16, 0
    %p99 = por %p97, %p98
    %s101 = sadd.s32 %s100, 1
    %p104 = scmp.eq.s32.totalorder %s10, 1
    %p105 = scmp.ne.s32.totalorder %s100, %s102
    %p106 = scmp.eq.s32.totalorder %s10, 0
    %p107 = por %p105, %p106
    %p108 = scmp.ne.s32.totalorder %s100, %s102
    %p109 = scmp.eq.s32.totalorder %s15, 1
    %p110 = por %p108, %p109
    %p111 = scmp.ne.s32.totalorder %s102, %s103
    %p112 = scmp.eq.s32.totalorder %s15, 0
    %p113 = por %p111, %p112
    %p114 = scmp.ne.s32.totalorder %s102, %s103
    %p115 = scmp.eq.s32.totalorder %s16, 1
    %p116 = por %p114, %p115
    %p118 = scmp.ne.s32.totalorder %s103, %s117
    %p119 = scmp.eq.s32.totalorder %s16, 0
    %p120 = por %p118, %p119
    %s121 = ssub.s32 %s17, %s29
    %s122 = ssub.s32 %s18, %s25
    %s123 = sor.u32 %s121, %s122
    %p124 = scmp.eq.s32.totalorder %s123, 0
    %s126 = sadd.s32 %s125, 1
    %s127 = scalar_select %p124, %s125, %s126
    %p130 = pneg %p124
    %p131 = scmp.eq.s32.totalorder %s10, 1
    %p132 = por %p130, %p131
    %p133 = scmp.ne.s32.totalorder %s125, %s128
    %p134 = scmp.eq.s32.totalorder %s10, 0
    %p135 = por %p133, %p134
    %p136 = scmp.ne.s32.totalorder %s125, %s128
    %p137 = scmp.eq.s32.totalorder %s15, 1
    %p138 = por %p136, %p137
    %p139 = scmp.ne.s32.totalorder %s128, %s129
    %p140 = scmp.eq.s32.totalorder %s15, 0
    %p141 = por %p139, %p140
    %p142 = scmp.ne.s32.totalorder %s128, %s129
    %p143 = scmp.eq.s32.totalorder %s16, 1
    %p144 = por %p142, %p143
    %p146 = scmp.ne.s32.totalorder %s129, %s145
    %p147 = scmp.eq.s32.totalorder %s16, 0
    %p148 = por %p146, %p147
    %p149 = scmp.le.s32.totalorder 1, %s10
    %p150 = scmp.lt.s32.totalorder %s10, 3
    %p151 = pnand %p149, %p150
    %p152 = pneg %p151
    // Predicated region
    $region9: #{res_unet_innermost_forward.11} parent=5 // pred_check
      _
    $region10: #{res_unet_innermost_forward.11} parent=5 // pred_check_branch
      %154 = sbr.rel (%p151) target = $region12
    $region11: #{res_unet_innermost_forward.11} parent=5 // pred_region
      %s155 = ssub.s32 %s10, 1
      // Predicated region
      $region13: #{res_unet_innermost_forward.11} parent=11 // pred_check
        %p156 = pneg %p71
      $region14: #{res_unet_innermost_forward.11} parent=11 // pred_check_branch
        %158 = sbr.rel (%p156) target = $region16
      $region15: #{res_unet_innermost_forward.11} parent=11 // pred_region
        _
      $region16: #{res_unet_innermost_forward.11} parent=11 // pred_fallthru
        _
      // Predicated region
      $region17: #{res_unet_innermost_forward.11} parent=11 // pred_check
        %p159 = pneg %p92
      $region18: #{res_unet_innermost_forward.11} parent=11 // pred_check_branch
        %161 = sbr.rel (%p159) target = $region20
      $region19: #{res_unet_innermost_forward.11} parent=11 // pred_region
        _
      $region20: #{res_unet_innermost_forward.11} parent=11 // pred_fallthru
        _
      // Predicated region
      $region21: #{res_unet_innermost_forward.11} parent=11 // pred_check
        %p162 = pneg %p113
      $region22: #{res_unet_innermost_forward.11} parent=11 // pred_check_branch
        %164 = sbr.rel (%p162) target = $region24
      $region23: #{res_unet_innermost_forward.11} parent=11 // pred_region
        _
      $region24: #{res_unet_innermost_forward.11} parent=11 // pred_fallthru
        _
    $region12: #{res_unet_innermost_forward.11} parent=5 // pred_fallthru
      _
    %p165 = scmp.lt.s32.totalorder %s10, 2
    // Predicated region
    $region25: #{res_unet_innermost_forward.11} parent=5 // pred_check
      %p166 = pneg %p165
    $region26: #{res_unet_innermost_forward.11} parent=5 // pred_check_branch
      %168 = sbr.rel (%p166) target = $region28
    $region27: #{res_unet_innermost_forward.11} parent=5 // pred_region
      // Predicated region
      $region29: #{res_unet_innermost_forward.11} parent=27 // pred_check
        %p169 = pneg %p44
      $region30: #{res_unet_innermost_forward.11} parent=27 // pred_check_branch
        %171 = sbr.rel (%p169) target = $region32
      $region31: #{res_unet_innermost_forward.11} parent=27 // pred_region
        %p172 = scmp.lt.s32.totalorder %s17, 1
        %s173 = scalar_select %p172, %s17, 1
        %p174 = scmp.lt.s32.totalorder %s18, 0
        %s175 = scalar_select %p174, %s18, 0
        %s176 = smul.addr %s173, 9
        %s177 = sadd.s32 %s175, %s176
        %s178 = smul.addr %s177, 4
        %s179 = scalar_lea.vmem %s0, %s178
      $region32: #{res_unet_innermost_forward.11} parent=27 // pred_fallthru
        _
    $region28: #{res_unet_innermost_forward.11} parent=5 // pred_fallthru
      _
    %p180 = scmp.le.s32.totalorder 1, %s10
    %p181 = scmp.lt.s32.totalorder %s10, 3
    %p182 = pnand %p180, %p181
    %p183 = pneg %p182
    // Predicated region
    $region33: #{res_unet_innermost_forward.11} parent=5 // pred_check
      _
    $region34: #{res_unet_innermost_forward.11} parent=5 // pred_check_branch
      %185 = sbr.rel (%p182) target = $region36
    $region35: #{res_unet_innermost_forward.11} parent=5 // pred_region
      %s186 = ssub.s32 %s10, 1
      %p187 = scmp.lt.s32.totalorder %s19, 1
      %s188 = scalar_select %p187, %s19, 1
      %p189 = scmp.lt.s32.totalorder %s20, 0
      %s190 = scalar_select %p189, %s20, 0
      %s191 = smul.addr %s188, 9
      %s192 = sadd.s32 %s190, %s191
      %s193 = smul.addr %s192, 4
      %s194 = scalar_lea.vmem %s0, %s193
      %p195 = pneg %p50
      %p196 = pneg %p47
      %p197 = pneg %p71
      %p198 = pneg %p68
      %p199 = pneg %p92
      %p200 = pneg %p89
      %p201 = pneg %p113
      %p202 = pneg %p110
      %p203 = pneg %p141
      %p204 = pneg %p138
      %p205 = scmp.lt.s32.totalorder %s19, 1
      %s206 = scalar_select %p205, %s19, 1
      %p207 = scmp.lt.s32.totalorder %s20, 0
      %s208 = scalar_select %p207, %s20, 0
      %s209 = sadd.s32 %s208, %s206
      %s210 = smul.addr %s209, 8
      %s211 = scalar_lea.vmem %s4, %s210
      %p212 = scmp.lt.s32.totalorder %s19, 1
      %s213 = scalar_select %p212, %s19, 1
      %p214 = scmp.lt.s32.totalorder %s20, 0
      %s215 = scalar_select %p214, %s20, 0
      %s216 = smul.addr %s213, 9
      %s217 = sadd.s32 %s215, %s216
      %s218 = smul.addr %s217, 4
      %s219 = scalar_lea.vmem %s0, %s218
      %p220 = scmp.lt.s32.totalorder %s19, 1
      %s221 = scalar_select %p220, %s19, 1
      %p222 = scmp.lt.s32.totalorder %s20, 0
      %s223 = scalar_select %p222, %s20, 0
      %s224 = sadd.s32 %s223, %s221
      %s225 = smul.addr %s224, 8
      %s226 = scalar_lea.vmem %s4, %s225
      %v228 = vld [vmem:[%s1] sm:$0xf]
      %v229 = vld [vmem:[%s219] sm:$0xf]
      %v230 = vld [vmem:[%s219 + $0x4] sm:$0xf]
      %v231 = vld [vmem:[%s219 + $0x8] sm:$0xf]
      %v232 = vld [vmem:[%s219 + $0xc] sm:$0xf]
      %v233 = vld [vmem:[%s219 + $0x10] sm:$0xf]
      %v234 = vld [vmem:[%s219 + $0x14] sm:$0xf]
      %v235 = vld [vmem:[%s219 + $0x18] sm:$0xf]
      %v236 = vld [vmem:[%s219 + $0x1c] sm:$0xf]
      %v237 = vld [vmem:[%s219 + $0x20] sm:$0xf]
      %v247 = vunpack.c.l.b16 %v229
      %v248 = vunpack.c.l.b16 %v230
      %v249 = vunpack.c.l.b16 %v231
      %v250 = vunpack.c.l.b16 %v232
      %v251 = vunpack.c.l.b16 %v233
      %v252 = vunpack.c.l.b16 %v234
      %v253 = vunpack.c.l.b16 %v235
      %v254 = vunpack.c.l.b16 %v236
      %v255 = vunpack.c.l.b16 %v237
      %v256 = vpack.c.b16 %v248, %v247
      %v257 = vpack.c.b16 %v250, %v249
      %v258 = vpack.c.b16 %v252, %v251
      %v259 = vpack.c.b16 %v254, %v253
      %v260 = vpack.c.b16 %v255, %v255
      %vm265 = vcmask 588800
      %v267 = vsel %vm265, %v228, 0
      %vm269 = vcmask 1043456
      %v271 = vsel %vm269, %v260, 0
      %273 = vmatprep.subr.bf16.mxu0 0
      %274 = vmatpush1.bf16.msra.mxu0 %v256
      %275 = vmatprep.subr.bf16.mxu0 0
      %276 = vmatpush1.bf16.msra.mxu0 %v257
      %277 = vmatprep.subr.bf16.mxu0 0
      %278 = vmatpush1.bf16.msra.mxu0 %v258
      %279 = vmatprep.subr.bf16.mxu0 0
      %280 = vmatpush1.bf16.msra.mxu0 %v259
      %281 = vmatprep.subr.bf16.mxu0 0
      %282 = vmatpush1.bf16.msra.mxu0 %v271
      %283 = vmatprep.subr.bf16.mxu0 0
      %284 = vmatpush1.bf16.msra.mxu0 0
      %285 = vmatprep.subr.bf16.mxu0 0
      %286 = vmatpush1.bf16.msra.mxu0 0
      %287 = vmatprep.subr.bf16.mxu0 0
      %288 = vmatpush1.bf16.msra.mxu0 0
      %289 = vmatprep.subr.bf16.mxu0 0
      %290 = vmatpush1.bf16.msra.mxu0 0
      %291 = vmatprep.subr.bf16.mxu0 0
      %292 = vmatpush1.bf16.msra.mxu0 0
      %293 = vmatprep.subr.bf16.mxu0 0
      %294 = vmatpush1.bf16.msra.mxu0 0
      %295 = vmatprep.subr.bf16.mxu0 0
      %296 = vmatpush1.bf16.msra.mxu0 0
      %297 = vmatprep.subr.bf16.mxu0 0
      %298 = vmatpush1.bf16.msra.mxu0 0
      %299 = vmatprep.subr.bf16.mxu0 0
      %300 = vmatpush1.bf16.msra.mxu0 0
      %301 = vmatprep.subr.bf16.mxu0 0
      %302 = vmatpush1.bf16.msra.mxu0 0
      %303 = vmatprep.subr.bf16.mxu0 0
      %304 = vmatpush1.bf16.msra.mxu0 0
      %305 = vmatprep.mubr.bf16.mxu0 0
      %306 = vmatmul.mubr.bf16.gmra.mrb[0].mxu0 %v267
      %v307 = vpop.f32.mrb[0].mxu0
      %v308 = vadd.f32 0.0, %v307
      %v309 = vpop.f32.mrb[0].mxu0
      %v310 = vpop.f32.mrb[0].mxu0
      %v311 = vpop.f32.mrb[0].mxu0
      %312 = vdwg.mxu0
      %v313 = vld [vmem:[%s2] sm:$0xff]
      %315 = vset.pattern.permute.xlu0 0
      %316 = vperm.xlu0 %315, %v313
      %v317 = vpop.permute.xlu0 %316
      %v319 = vmul.f32 %v308, %v317
      %v320 = vld [vmem:[%s3] sm:$0xff]
      %322 = vset.pattern.permute.xlu0 0
      %323 = vperm.xlu0 %322, %v320
      %v324 = vpop.permute.xlu0 %323
      %v326 = vadd.f32 %v319, %v324
      %v327 = vmax.f32 %v326, 0.0
      %vm328 = vcmask 523264
      %329 = vst.msk [vmem:[%s226] sm:$0xff] %vm328, %v327
      %p330 = scmp.lt.s32.totalorder %s19, 1
      %s331 = scalar_select %p330, %s19, 1
      %p332 = scmp.lt.s32.totalorder %s20, 0
      %s333 = scalar_select %p332, %s20, 0
      %s334 = sadd.s32 %s333, %s331
      %s335 = smul.addr %s334, 8
      %s336 = scalar_lea.vmem %s4, %s335
      // Predicated region
      $region37: #{res_unet_innermost_forward.11} parent=35 // pred_check
        %p337 = pneg %p138
      $region38: #{res_unet_innermost_forward.11} parent=35 // pred_check_branch
        %339 = sbr.rel (%p337) target = $region40
      $region39: #{res_unet_innermost_forward.11} parent=35 // pred_region
        _
      $region40: #{res_unet_innermost_forward.11} parent=35 // pred_fallthru
        _
    $region36: #{res_unet_innermost_forward.11} parent=5 // pred_fallthru
      _
    %p340 = scmp.le.s32.totalorder 2, %s10
    // Predicated region
    $region41: #{res_unet_innermost_forward.11} parent=5 // pred_check
      %p341 = pneg %p340
    $region42: #{res_unet_innermost_forward.11} parent=5 // pred_check_branch
      %343 = sbr.rel (%p341) target = $region44
    $region43: #{res_unet_innermost_forward.11} parent=5 // pred_region
      %s344 = ssub.s32 %s10, 2
      // Predicated region
      $region45: #{res_unet_innermost_forward.11} parent=43 // pred_check
        %p345 = pneg %p144
      $region46: #{res_unet_innermost_forward.11} parent=43 // pred_check_branch
        %347 = sbr.rel (%p345) target = $region48
      $region47: #{res_unet_innermost_forward.11} parent=43 // pred_region
        %p348 = scmp.lt.s32.totalorder %s21, 1
        %s349 = scalar_select %p348, %s21, 1
        %p350 = scmp.lt.s32.totalorder %s22, 0
        %s351 = scalar_select %p350, %s22, 0
        %s352 = sadd.s32 %s351, %s349
        %s353 = smul.addr %s352, 8
        %s354 = scalar_lea.vmem %s4, %s353
      $region48: #{res_unet_innermost_forward.11} parent=43 // pred_fallthru
        _
    $region44: #{res_unet_innermost_forward.11} parent=5 // pred_fallthru
      _
  $region6: #{res_unet_innermost_forward.11} parent=0 // loop_footer
    %s14 = sadd.s32 1, %s10
  $region7: #{res_unet_innermost_forward.11} parent=0 // loop_footer_branch
    %9 = sbr.rel target = $region3
  $region8: #{res_unet_innermost_forward.11} parent=0 // loop_exit
    _

// kernel: res_unet_innermost_forward.12
$region0: #{res_unet_innermost_forward.12}
  #allocation0 [shape = 'u32[]', space=smem, size = 0x4, offset = 0x4, fixed_abs, tag = 'smem constant byte address 0x4 - core index']
  #allocation1 [shape = 'u32[144,128]{1,0:T(1,128)}', space=vmem, size = 0x12000, scoped, tag = 'internal scratch']
  %s0 = inlined_call_operand.vmem [shape: bf16[2,72,64], index: 0, kind: input, shape index: {}]
  %s1 = inlined_call_operand.vmem [shape: bf16[8,72], index: 1, kind: input, shape index: {}]
  %s2 = inlined_call_operand.vmem [shape: f32[8,1], index: 2, kind: input, shape index: {}]
  %s3 = inlined_call_operand.vmem [shape: f32[8,1], index: 3, kind: input, shape index: {}]
  %s4 = inlined_call_operand.vmem [shape: f32[2,8,64], index: 4, kind: input, shape index: {}]
  %s5 = inlined_call_operand.vmem [shape: f32[2,8,64], index: 5, kind: output, shape index: {}]
  %s6 = sld [smem:[#allocation0]]
  $region53: #{res_unet_innermost_forward.12} parent=0
    _
  %s8 = ssub.s32 1, %s6
  %s9 = scalar_select 0, %s8, %s6
  loop: start=0, step=1, limit=4
  $region2: #{res_unet_innermost_forward.12} parent=0 // loop_pre_header
    _
  $region3: #{res_unet_innermost_forward.12} parent=0 // loop_header
    %s11 = sphi 0, %s15
    %p12 = scmp.ge.s32.totalorder %s11, 4
    %s18 = sphi 0, %s30
    %s19 = sphi 0, %s26
    %s20 = sphi 0, %s18
    %s21 = sphi 0, %s19
    %s22 = sphi 0, %s20
    %s23 = sphi 0, %s21
    %s35 = sphi 0, %s37
    %s38 = sphi 0, %s35
    %s39 = sphi 0, %s38
    %s55 = sphi 0, %s39
    %s59 = sphi 0, %s59
    %s61 = sphi 0, %s59
    %s62 = sphi 0, %s61
    %s76 = sphi 0, %s62
    %s80 = sphi 0, %s80
    %s82 = sphi 0, %s80
    %s83 = sphi 0, %s82
    %s97 = sphi 0, %s83
    %s101 = sphi 0, %s101
    %s103 = sphi 0, %s101
    %s104 = sphi 0, %s103
    %s118 = sphi 0, %s104
    %s126 = sphi 0, %s128
    %s129 = sphi 0, %s126
    %s130 = sphi 0, %s129
    %s146 = sphi 0, %s130
    %s154 = sphi 0, %s156
    %s157 = sphi 0, %s154
    %s158 = sphi 0, %s157
    %s174 = sphi 0, %s158
  $region4: #{res_unet_innermost_forward.12} parent=0 // loop_header_branch
    %14 = sbr.rel (%p12) target = $region8
  $region5: #{res_unet_innermost_forward.12} parent=0 // loop_body
    %s16 = ssub.s32 %s11, 1
    %s17 = ssub.s32 %s11, 2
    %s24 = sadd.s32 1, %s19
    %p25 = scmp.ge.s32.totalorder %s24, 1
    %s26 = scalar_select %p25, 0, %s24
    %s27 = sadd.s32 1, %s18
    %s28 = scalar_select %p25, %s27, %s18
    %p29 = scmp.ge.s32.totalorder %s28, 2
    %s30 = scalar_select %p29, 0, %s28
    %s31 = ssub.s32 %s18, %s30
    %s32 = ssub.s32 %s19, %s26
    %s33 = sor.u32 %s31, %s32
    %p34 = scmp.eq.s32.totalorder %s33, 0
    %s36 = sadd.s32 %s35, 1
    %s37 = scalar_select %p34, %s35, %s36
    %p40 = pneg %p34
    %p41 = scmp.eq.s32.totalorder %s11, 1
    %p42 = por %p40, %p41
    %p43 = scmp.ne.s32.totalorder %s35, %s38
    %p44 = scmp.eq.s32.totalorder %s11, 0
    %p45 = por %p43, %p44
    %p46 = scmp.ne.s32.totalorder %s35, %s38
    %p47 = scmp.eq.s32.totalorder %s16, 1
    %p48 = por %p46, %p47
    %p49 = scmp.ne.s32.totalorder %s38, %s39
    %p50 = scmp.eq.s32.totalorder %s16, 0
    %p51 = por %p49, %p50
    %p52 = scmp.ne.s32.totalorder %s38, %s39
    %p53 = scmp.eq.s32.totalorder %s17, 1
    %p54 = por %p52, %p53
    %p56 = scmp.ne.s32.totalorder %s39, %s55
    %p57 = scmp.eq.s32.totalorder %s17, 0
    %p58 = por %p56, %p57
    %s60 = sadd.s32 %s59, 1
    %p63 = scmp.eq.s32.totalorder %s11, 1
    %p64 = scmp.ne.s32.totalorder %s59, %s61
    %p65 = scmp.eq.s32.totalorder %s11, 0
    %p66 = por %p64, %p65
    %p67 = scmp.ne.s32.totalorder %s59, %s61
    %p68 = scmp.eq.s32.totalorder %s16, 1
    %p69 = por %p67, %p68
    %p70 = scmp.ne.s32.totalorder %s61, %s62
    %p71 = scmp.eq.s32.totalorder %s16, 0
    %p72 = por %p70, %p71
    %p73 = scmp.ne.s32.totalorder %s61, %s62
    %p74 = scmp.eq.s32.totalorder %s17, 1
    %p75 = por %p73, %p74
    %p77 = scmp.ne.s32.totalorder %s62, %s76
    %p78 = scmp.eq.s32.totalorder %s17, 0
    %p79 = por %p77, %p78
    %s81 = sadd.s32 %s80, 1
    %p84 = scmp.eq.s32.totalorder %s11, 1
    %p85 = scmp.ne.s32.totalorder %s80, %s82
    %p86 = scmp.eq.s32.totalorder %s11, 0
    %p87 = por %p85, %p86
    %p88 = scmp.ne.s32.totalorder %s80, %s82
    %p89 = scmp.eq.s32.totalorder %s16, 1
    %p90 = por %p88, %p89
    %p91 = scmp.ne.s32.totalorder %s82, %s83
    %p92 = scmp.eq.s32.totalorder %s16, 0
    %p93 = por %p91, %p92
    %p94 = scmp.ne.s32.totalorder %s82, %s83
    %p95 = scmp.eq.s32.totalorder %s17, 1
    %p96 = por %p94, %p95
    %p98 = scmp.ne.s32.totalorder %s83, %s97
    %p99 = scmp.eq.s32.totalorder %s17, 0
    %p100 = por %p98, %p99
    %s102 = sadd.s32 %s101, 1
    %p105 = scmp.eq.s32.totalorder %s11, 1
    %p106 = scmp.ne.s32.totalorder %s101, %s103
    %p107 = scmp.eq.s32.totalorder %s11, 0
    %p108 = por %p106, %p107
    %p109 = scmp.ne.s32.totalorder %s101, %s103
    %p110 = scmp.eq.s32.totalorder %s16, 1
    %p111 = por %p109, %p110
    %p112 = scmp.ne.s32.totalorder %s103, %s104
    %p113 = scmp.eq.s32.totalorder %s16, 0
    %p114 = por %p112, %p113
    %p115 = scmp.ne.s32.totalorder %s103, %s104
    %p116 = scmp.eq.s32.totalorder %s17, 1
    %p117 = por %p115, %p116
    %p119 = scmp.ne.s32.totalorder %s104, %s118
    %p120 = scmp.eq.s32.totalorder %s17, 0
    %p121 = por %p119, %p120
    %s122 = ssub.s32 %s18, %s30
    %s123 = ssub.s32 %s19, %s26
    %s124 = sor.u32 %s122, %s123
    %p125 = scmp.eq.s32.totalorder %s124, 0
    %s127 = sadd.s32 %s126, 1
    %s128 = scalar_select %p125, %s126, %s127
    %p131 = pneg %p125
    %p132 = scmp.eq.s32.totalorder %s11, 1
    %p133 = por %p131, %p132
    %p134 = scmp.ne.s32.totalorder %s126, %s129
    %p135 = scmp.eq.s32.totalorder %s11, 0
    %p136 = por %p134, %p135
    %p137 = scmp.ne.s32.totalorder %s126, %s129
    %p138 = scmp.eq.s32.totalorder %s16, 1
    %p139 = por %p137, %p138
    %p140 = scmp.ne.s32.totalorder %s129, %s130
    %p141 = scmp.eq.s32.totalorder %s16, 0
    %p142 = por %p140, %p141
    %p143 = scmp.ne.s32.totalorder %s129, %s130
    %p144 = scmp.eq.s32.totalorder %s17, 1
    %p145 = por %p143, %p144
    %p147 = scmp.ne.s32.totalorder %s130, %s146
    %p148 = scmp.eq.s32.totalorder %s17, 0
    %p149 = por %p147, %p148
    %s150 = ssub.s32 %s18, %s30
    %s151 = ssub.s32 %s19, %s26
    %s152 = sor.u32 %s150, %s151
    %p153 = scmp.eq.s32.totalorder %s152, 0
    %s155 = sadd.s32 %s154, 1
    %s156 = scalar_select %p153, %s154, %s155
    %p159 = pneg %p153
    %p160 = scmp.eq.s32.totalorder %s11, 1
    %p161 = por %p159, %p160
    %p162 = scmp.ne.s32.totalorder %s154, %s157
    %p163 = scmp.eq.s32.totalorder %s11, 0
    %p164 = por %p162, %p163
    %p165 = scmp.ne.s32.totalorder %s154, %s157
    %p166 = scmp.eq.s32.totalorder %s16, 1
    %p167 = por %p165, %p166
    %p168 = scmp.ne.s32.totalorder %s157, %s158
    %p169 = scmp.eq.s32.totalorder %s16, 0
    %p170 = por %p168, %p169
    %p171 = scmp.ne.s32.totalorder %s157, %s158
    %p172 = scmp.eq.s32.totalorder %s17, 1
    %p173 = por %p171, %p172
    %p175 = scmp.ne.s32.totalorder %s158, %s174
    %p176 = scmp.eq.s32.totalorder %s17, 0
    %p177 = por %p175, %p176
    %p178 = scmp.le.s32.totalorder 1, %s11
    %p179 = scmp.lt.s32.totalorder %s11, 3
    %p180 = pnand %p178, %p179
    %p181 = pneg %p180
    // Predicated region
    $region9: #{res_unet_innermost_forward.12} parent=5 // pred_check
      _
    $region10: #{res_unet_innermost_forward.12} parent=5 // pred_check_branch
      %183 = sbr.rel (%p180) target = $region12
    $region11: #{res_unet_innermost_forward.12} parent=5 // pred_region
      %s184 = ssub.s32 %s11, 1
      // Predicated region
      $region13: #{res_unet_innermost_forward.12} parent=11 // pred_check
        %p185 = pneg %p72
      $region14: #{res_unet_innermost_forward.12} parent=11 // pred_check_branch
        %187 = sbr.rel (%p185) target = $region16
      $region15: #{res_unet_innermost_forward.12} parent=11 // pred_region
        _
      $region16: #{res_unet_innermost_forward.12} parent=11 // pred_fallthru
        _
      // Predicated region
      $region17: #{res_unet_innermost_forward.12} parent=11 // pred_check
        %p188 = pneg %p93
      $region18: #{res_unet_innermost_forward.12} parent=11 // pred_check_branch
        %190 = sbr.rel (%p188) target = $region20
      $region19: #{res_unet_innermost_forward.12} parent=11 // pred_region
        _
      $region20: #{res_unet_innermost_forward.12} parent=11 // pred_fallthru
        _
      // Predicated region
      $region21: #{res_unet_innermost_forward.12} parent=11 // pred_check
        %p191 = pneg %p114
      $region22: #{res_unet_innermost_forward.12} parent=11 // pred_check_branch
        %193 = sbr.rel (%p191) target = $region24
      $region23: #{res_unet_innermost_forward.12} parent=11 // pred_region
        _
      $region24: #{res_unet_innermost_forward.12} parent=11 // pred_fallthru
        _
    $region12: #{res_unet_innermost_forward.12} parent=5 // pred_fallthru
      _
    %p194 = scmp.lt.s32.totalorder %s11, 2
    // Predicated region
    $region25: #{res_unet_innermost_forward.12} parent=5 // pred_check
      %p195 = pneg %p194
    $region26: #{res_unet_innermost_forward.12} parent=5 // pred_check_branch
      %197 = sbr.rel (%p195) target = $region28
    $region27: #{res_unet_innermost_forward.12} parent=5 // pred_region
      // Predicated region
      $region29: #{res_unet_innermost_forward.12} parent=27 // pred_check
        %p198 = pneg %p45
      $region30: #{res_unet_innermost_forward.12} parent=27 // pred_check_branch
        %200 = sbr.rel (%p198) target = $region32
      $region31: #{res_unet_innermost_forward.12} parent=27 // pred_region
        %p201 = scmp.lt.s32.totalorder %s18, 1
        %s202 = scalar_select %p201, %s18, 1
        %p203 = scmp.lt.s32.totalorder %s19, 0
        %s204 = scalar_select %p203, %s19, 0
        %s205 = smul.addr %s202, 9
        %s206 = sadd.s32 %s204, %s205
        %s207 = smul.addr %s206, 4
        %s208 = scalar_lea.vmem %s0, %s207
      $region32: #{res_unet_innermost_forward.12} parent=27 // pred_fallthru
        _
      // Predicated region
      $region33: #{res_unet_innermost_forward.12} parent=27 // pred_check
        %p209 = pneg %p136
      $region34: #{res_unet_innermost_forward.12} parent=27 // pred_check_branch
        %211 = sbr.rel (%p209) target = $region36
      $region35: #{res_unet_innermost_forward.12} parent=27 // pred_region
        %p212 = scmp.lt.s32.totalorder %s18, 1
        %s213 = scalar_select %p212, %s18, 1
        %p214 = scmp.lt.s32.totalorder %s19, 0
        %s215 = scalar_select %p214, %s19, 0
        %s216 = sadd.s32 %s215, %s213
        %s217 = smul.addr %s216, 8
        %s218 = scalar_lea.vmem %s4, %s217
      $region36: #{res_unet_innermost_forward.12} parent=27 // pred_fallthru
        _
    $region28: #{res_unet_innermost_forward.12} parent=5 // pred_fallthru
      _
    %p219 = scmp.le.s32.totalorder 1, %s11
    %p220 = scmp.lt.s32.totalorder %s11, 3
    %p221 = pnand %p219, %p220
    %p222 = pneg %p221
    // Predicated region
    $region37: #{res_unet_innermost_forward.12} parent=5 // pred_check
      _
    $region38: #{res_unet_innermost_forward.12} parent=5 // pred_check_branch
      %224 = sbr.rel (%p221) target = $region40
    $region39: #{res_unet_innermost_forward.12} parent=5 // pred_region
      %s225 = ssub.s32 %s11, 1
      %p226 = scmp.lt.s32.totalorder %s20, 1
      %s227 = scalar_select %p226, %s20, 1
      %p228 = scmp.lt.s32.totalorder %s21, 0
      %s229 = scalar_select %p228, %s21, 0
      %s230 = smul.addr %s227, 9
      %s231 = sadd.s32 %s229, %s230
      %s232 = smul.addr %s231, 4
      %s233 = scalar_lea.vmem %s0, %s232
      %p234 = pneg %p51
      %p235 = pneg %p48
      %p236 = pneg %p72
      %p237 = pneg %p69
      %p238 = pneg %p93
      %p239 = pneg %p90
      %p240 = pneg %p114
      %p241 = pneg %p111
      %p242 = scmp.lt.s32.totalorder %s20, 1
      %s243 = scalar_select %p242, %s20, 1
      %p244 = scmp.lt.s32.totalorder %s21, 0
      %s245 = scalar_select %p244, %s21, 0
      %s246 = sadd.s32 %s245, %s243
      %s247 = smul.addr %s246, 8
      %s248 = scalar_lea.vmem %s4, %s247
      %p249 = pneg %p142
      %p250 = pneg %p139
      %p251 = pneg %p170
      %p252 = pneg %p167
      %p253 = scmp.lt.s32.totalorder %s20, 1
      %s254 = scalar_select %p253, %s20, 1
      %p255 = scmp.lt.s32.totalorder %s21, 0
      %s256 = scalar_select %p255, %s21, 0
      %s257 = sadd.s32 %s256, %s254
      %s258 = smul.addr %s257, 8
      %s259 = scalar_lea.vmem %s5, %s258
      %p260 = scmp.lt.s32.totalorder %s20, 1
      %s261 = scalar_select %p260, %s20, 1
      %p262 = scmp.lt.s32.totalorder %s21, 0
      %s263 = scalar_select %p262, %s21, 0
      %s264 = smul.addr %s261, 9
      %s265 = sadd.s32 %s263, %s264
      %s266 = smul.addr %s265, 4
      %s267 = scalar_lea.vmem %s0, %s266
      %p268 = scmp.lt.s32.totalorder %s20, 1
      %s269 = scalar_select %p268, %s20, 1
      %p270 = scmp.lt.s32.totalorder %s21, 0
      %s271 = scalar_select %p270, %s21, 0
      %s272 = sadd.s32 %s271, %s269
      %s273 = smul.addr %s272, 8
      %s274 = scalar_lea.vmem %s4, %s273
      %p275 = scmp.lt.s32.totalorder %s20, 1
      %s276 = scalar_select %p275, %s20, 1
      %p277 = scmp.lt.s32.totalorder %s21, 0
      %s278 = scalar_select %p277, %s21, 0
      %s279 = sadd.s32 %s278, %s276
      %s280 = smul.addr %s279, 8
      %s281 = scalar_lea.vmem %s5, %s280
      %v283 = vld [vmem:[%s1] sm:$0xf]
      %v284 = vld [vmem:[%s267] sm:$0xf]
      %v285 = vld [vmem:[%s267 + $0x4] sm:$0xf]
      %v286 = vld [vmem:[%s267 + $0x8] sm:$0xf]
      %v287 = vld [vmem:[%s267 + $0xc] sm:$0xf]
      %v288 = vld [vmem:[%s267 + $0x10] sm:$0xf]
      %v289 = vld [vmem:[%s267 + $0x14] sm:$0xf]
      %v290 = vld [vmem:[%s267 + $0x18] sm:$0xf]
      %v291 = vld [vmem:[%s267 + $0x1c] sm:$0xf]
      %v292 = vld [vmem:[%s267 + $0x20] sm:$0xf]
      %v302 = vunpack.c.l.b16 %v284
      %v303 = vunpack.c.l.b16 %v285
      %v304 = vunpack.c.l.b16 %v286
      %v305 = vunpack.c.l.b16 %v287
      %v306 = vunpack.c.l.b16 %v288
      %v307 = vunpack.c.l.b16 %v289
      %v308 = vunpack.c.l.b16 %v290
      %v309 = vunpack.c.l.b16 %v291
      %v310 = vunpack.c.l.b16 %v292
      %v311 = vpack.c.b16 %v303, %v302
      %v312 = vpack.c.b16 %v305, %v304
      %v313 = vpack.c.b16 %v307, %v306
      %v314 = vpack.c.b16 %v309, %v308
      %v315 = vpack.c.b16 %v310, %v310
      %vm320 = vcmask 588800
      %v322 = vsel %vm320, %v283, 0
      %vm324 = vcmask 1043456
      %v326 = vsel %vm324, %v315, 0
      %328 = vmatprep.subr.bf16.mxu0 0
      %329 = vmatpush1.bf16.msra.mxu0 %v311
      %330 = vmatprep.subr.bf16.mxu0 0
      %331 = vmatpush1.bf16.msra.mxu0 %v312
      %332 = vmatprep.subr.bf16.mxu0 0
      %333 = vmatpush1.bf16.msra.mxu0 %v313
      %334 = vmatprep.subr.bf16.mxu0 0
      %335 = vmatpush1.bf16.msra.mxu0 %v314
      %336 = vmatprep.subr.bf16.mxu0 0
      %337 = vmatpush1.bf16.msra.mxu0 %v326
      %338 = vmatprep.subr.bf16.mxu0 0
      %339 = vmatpush1.bf16.msra.mxu0 0
      %340 = vmatprep.subr.bf16.mxu0 0
      %341 = vmatpush1.bf16.msra.mxu0 0
      %342 = vmatprep.subr.bf16.mxu0 0
      %343 = vmatpush1.bf16.msra.mxu0 0
      %344 = vmatprep.subr.bf16.mxu0 0
      %345 = vmatpush1.bf16.msra.mxu0 0
      %346 = vmatprep.subr.bf16.mxu0 0
      %347 = vmatpush1.bf16.msra.mxu0 0
      %348 = vmatprep.subr.bf16.mxu0 0
      %349 = vmatpush1.bf16.msra.mxu0 0
      %350 = vmatprep.subr.bf16.mxu0 0
      %351 = vmatpush1.bf16.msra.mxu0 0
      %352 = vmatprep.subr.bf16.mxu0 0
      %353 = vmatpush1.bf16.msra.mxu0 0
      %354 = vmatprep.subr.bf16.mxu0 0
      %355 = vmatpush1.bf16.msra.mxu0 0
      %356 = vmatprep.subr.bf16.mxu0 0
      %357 = vmatpush1.bf16.msra.mxu0 0
      %358 = vmatprep.subr.bf16.mxu0 0
      %359 = vmatpush1.bf16.msra.mxu0 0
      %360 = vmatprep.mubr.bf16.mxu0 0
      %361 = vmatmul.mubr.bf16.gmra.mrb[0].mxu0 %v322
      %v362 = vpop.f32.mrb[0].mxu0
      %v363 = vadd.f32 0.0, %v362
      %v364 = vpop.f32.mrb[0].mxu0
      %v365 = vpop.f32.mrb[0].mxu0
      %v366 = vpop.f32.mrb[0].mxu0
      %367 = vdwg.mxu0
      %v368 = vld [vmem:[%s2] sm:$0xff]
      %370 = vset.pattern.permute.xlu0 0
      %371 = vperm.xlu0 %370, %v368
      %v372 = vpop.permute.xlu0 %371
      %v374 = vmul.f32 %v363, %v372
      %v375 = vld [vmem:[%s3] sm:$0xff]
      %377 = vset.pattern.permute.xlu0 0
      %378 = vperm.xlu0 %377, %v375
      %v379 = vpop.permute.xlu0 %378
      %v381 = vadd.f32 %v374, %v379
      %v382 = vld [vmem:[%s274] sm:$0xff]
      %v383 = vadd.f32 %v381, %v382
      %v384 = vmax.f32 %v383, 0.0
      %vm385 = vcmask 523264
      %386 = vst.msk [vmem:[%s281] sm:$0xff] %vm385, %v384
      %p387 = scmp.lt.s32.totalorder %s20, 1
      %s388 = scalar_select %p387, %s20, 1
      %p389 = scmp.lt.s32.totalorder %s21, 0
      %s390 = scalar_select %p389, %s21, 0
      %s391 = sadd.s32 %s390, %s388
      %s392 = smul.addr %s391, 8
      %s393 = scalar_lea.vmem %s5, %s392
      // Predicated region
      $region41: #{res_unet_innermost_forward.12} parent=39 // pred_check
        %p394 = pneg %p167
      $region42: #{res_unet_innermost_forward.12} parent=39 // pred_check_branch
        %396 = sbr.rel (%p394) target = $region44
      $region43: #{res_unet_innermost_forward.12} parent=39 // pred_region
        _
      $region44: #{res_unet_innermost_forward.12} parent=39 // pred_fallthru
        _
    $region40: #{res_unet_innermost_forward.12} parent=5 // pred_fallthru
      _
    %p397 = scmp.le.s32.totalorder 2, %s11
    // Predicated region
    $region45: #{res_unet_innermost_forward.12} parent=5 // pred_check
      %p398 = pneg %p397
    $region46: #{res_unet_innermost_forward.12} parent=5 // pred_check_branch
      %400 = sbr.rel (%p398) target = $region48
    $region47: #{res_unet_innermost_forward.12} parent=5 // pred_region
      %s401 = ssub.s32 %s11, 2
      // Predicated region
      $region49: #{res_unet_innermost_forward.12} parent=47 // pred_check
        %p402 = pneg %p173
      $region50: #{res_unet_innermost_forward.12} parent=47 // pred_check_branch
        %404 = sbr.rel (%p402) target = $region52
      $region51: #{res_unet_innermost_forward.12} parent=47 // pred_region
        %p405 = scmp.lt.s32.totalorder %s22, 1
        %s406 = scalar_select %p405, %s22, 1
        %p407 = scmp.lt.s32.totalorder %s23, 0
        %s408 = scalar_select %p407, %s23, 0
        %s409 = sadd.s32 %s408, %s406
        %s410 = smul.addr %s409, 8
        %s411 = scalar_lea.vmem %s5, %s410
      $region52: #{res_unet_innermost_forward.12} parent=47 // pred_fallthru
        _
    $region48: #{res_unet_innermost_forward.12} parent=5 // pred_fallthru
      _
  $region6: #{res_unet_innermost_forward.12} parent=0 // loop_footer
    %s15 = sadd.s32 1, %s11
  $region7: #{res_unet_innermost_forward.12} parent=0 // loop_footer_branch
    %10 = sbr.rel target = $region3
  $region8: #{res_unet_innermost_forward.12} parent=0 // loop_exit
    _

// kernel: res_unet_innermost_forward.15
$region0: #{res_unet_innermost_forward.15}
  #allocation0 [shape = 'u32[]', space=smem, size = 0x4, offset = 0x4, fixed_abs, tag = 'smem constant byte address 0x4 - core index']
  #allocation1 [shape = 'u32[144,128]{1,0:T(1,128)}', space=vmem, size = 0x12000, scoped, tag = 'internal scratch']
  %s0 = inlined_call_operand.vmem [shape: bf16[2,72,256], index: 0, kind: input, shape index: {}]
  %s1 = inlined_call_operand.vmem [shape: bf16[4,72], index: 1, kind: input, shape index: {}]
  %s2 = inlined_call_operand.vmem [shape: f32[4,1], index: 2, kind: input, shape index: {}]
  %s3 = inlined_call_operand.vmem [shape: f32[4,1], index: 3, kind: input, shape index: {}]
  %s4 = inlined_call_operand.vmem [shape: f32[2,4,256], index: 4, kind: output, shape index: {}]
  %s5 = sld [smem:[#allocation0]]
  $region49: #{res_unet_innermost_forward.15} parent=0
    _
  %s7 = ssub.s32 1, %s5
  %s8 = scalar_select 0, %s7, %s5
  loop: start=0, step=1, limit=4
  $region2: #{res_unet_innermost_forward.15} parent=0 // loop_pre_header
    _
  $region3: #{res_unet_innermost_forward.15} parent=0 // loop_header
    %s10 = sphi 0, %s14
    %p11 = scmp.ge.s32.totalorder %s10, 4
    %s17 = sphi 0, %s29
    %s18 = sphi 0, %s25
    %s19 = sphi 0, %s17
    %s20 = sphi 0, %s18
    %s21 = sphi 0, %s19
    %s22 = sphi 0, %s20
    %s34 = sphi 0, %s36
    %s37 = sphi 0, %s34
    %s38 = sphi 0, %s37
    %s54 = sphi 0, %s38
    %s58 = sphi 0, %s58
    %s60 = sphi 0, %s58
    %s61 = sphi 0, %s60
    %s75 = sphi 0, %s61
    %s79 = sphi 0, %s79
    %s81 = sphi 0, %s79
    %s82 = sphi 0, %s81
    %s96 = sphi 0, %s82
    %s100 = sphi 0, %s100
    %s102 = sphi 0, %s100
    %s103 = sphi 0, %s102
    %s117 = sphi 0, %s103
    %s125 = sphi 0, %s127
    %s128 = sphi 0, %s125
    %s129 = sphi 0, %s128
    %s145 = sphi 0, %s129
  $region4: #{res_unet_innermost_forward.15} parent=0 // loop_header_branch
    %13 = sbr.rel (%p11) target = $region8
  $region5: #{res_unet_innermost_forward.15} parent=0 // loop_body
    %s15 = ssub.s32 %s10, 1
    %s16 = ssub.s32 %s10, 2
    %s23 = sadd.s32 1, %s18
    %p24 = scmp.ge.s32.totalorder %s23, 1
    %s25 = scalar_select %p24, 0, %s23
    %s26 = sadd.s32 1, %s17
    %s27 = scalar_select %p24, %s26, %s17
    %p28 = scmp.ge.s32.totalorder %s27, 2
    %s29 = scalar_select %p28, 0, %s27
    %s30 = ssub.s32 %s17, %s29
    %s31 = ssub.s32 %s18, %s25
    %s32 = sor.u32 %s30, %s31
    %p33 = scmp.eq.s32.totalorder %s32, 0
    %s35 = sadd.s32 %s34, 1
    %s36 = scalar_select %p33, %s34, %s35
    %p39 = pneg %p33
    %p40 = scmp.eq.s32.totalorder %s10, 1
    %p41 = por %p39, %p40
    %p42 = scmp.ne.s32.totalorder %s34, %s37
    %p43 = scmp.eq.s32.totalorder %s10, 0
    %p44 = por %p42, %p43
    %p45 = scmp.ne.s32.totalorder %s34, %s37
    %p46 = scmp.eq.s32.totalorder %s15, 1
    %p47 = por %p45, %p46
    %p48 = scmp.ne.s32.totalorder %s37, %s38
    %p49 = scmp.eq.s32.totalorder %s15, 0
    %p50 = por %p48, %p49
    %p51 = scmp.ne.s32.totalorder %s37, %s38
    %p52 = scmp.eq.s32.totalorder %s16, 1
    %p53 = por %p51, %p52
    %p55 = scmp.ne.s32.totalorder %s38, %s54
    %p56 = scmp.eq.s32.totalorder %s16, 0
    %p57 = por %p55, %p56
    %s59 = sadd.s32 %s58, 1
    %p62 = scmp.eq.s32.totalorder %s10, 1
    %p63 = scmp.ne.s32.totalorder %s58, %s60
    %p64 = scmp.eq.s32.totalorder %s10, 0
    %p65 = por %p63, %p64
    %p66 = scmp.ne.s32.totalorder %s58, %s60
    %p67 = scmp.eq.s32.totalorder %s15, 1
    %p68 = por %p66, %p67
    %p69 = scmp.ne.s32.totalorder %s60, %s61
    %p70 = scmp.eq.s32.totalorder %s15, 0
    %p71 = por %p69, %p70
    %p72 = scmp.ne.s32.totalorder %s60, %s61
    %p73 = scmp.eq.s32.totalorder %s16, 1
    %p74 = por %p72, %p73
    %p76 = scmp.ne.s32.totalorder %s61, %s75
    %p77 = scmp.eq.s32.totalorder %s16, 0
    %p78 = por %p76, %p77
    %s80 = sadd.s32 %s79, 1
    %p83 = scmp.eq.s32.totalorder %s10, 1
    %p84 = scmp.ne.s32.totalorder %s79, %s81
    %p85 = scmp.eq.s32.totalorder %s10, 0
    %p86 = por %p84, %p85
    %p87 = scmp.ne.s32.totalorder %s79, %s81
    %p88 = scmp.eq.s32.totalorder %s15, 1
    %p89 = por %p87, %p88
    %p90 = scmp.ne.s32.totalorder %s81, %s82
    %p91 = scmp.eq.s32.totalorder %s15, 0
    %p92 = por %p90, %p91
    %p93 = scmp.ne.s32.totalorder %s81, %s82
    %p94 = scmp.eq.s32.totalorder %s16, 1
    %p95 = por %p93, %p94
    %p97 = scmp.ne.s32.totalorder %s82, %s96
    %p98 = scmp.eq.s32.totalorder %s16, 0
    %p99 = por %p97, %p98
    %s101 = sadd.s32 %s100, 1
    %p104 = scmp.eq.s32.totalorder %s10, 1
    %p105 = scmp.ne.s32.totalorder %s100, %s102
    %p106 = scmp.eq.s32.totalorder %s10, 0
    %p107 = por %p105, %p106
    %p108 = scmp.ne.s32.totalorder %s100, %s102
    %p109 = scmp.eq.s32.totalorder %s15, 1
    %p110 = por %p108, %p109
    %p111 = scmp.ne.s32.totalorder %s102, %s103
    %p112 = scmp.eq.s32.totalorder %s15, 0
    %p113 = por %p111, %p112
    %p114 = scmp.ne.s32.totalorder %s102, %s103
    %p115 = scmp.eq.s32.totalorder %s16, 1
    %p116 = por %p114, %p115
    %p118 = scmp.ne.s32.totalorder %s103, %s117
    %p119 = scmp.eq.s32.totalorder %s16, 0
    %p120 = por %p118, %p119
    %s121 = ssub.s32 %s17, %s29
    %s122 = ssub.s32 %s18, %s25
    %s123 = sor.u32 %s121, %s122
    %p124 = scmp.eq.s32.totalorder %s123, 0
    %s126 = sadd.s32 %s125, 1
    %s127 = scalar_select %p124, %s125, %s126
    %p130 = pneg %p124
    %p131 = scmp.eq.s32.totalorder %s10, 1
    %p132 = por %p130, %p131
    %p133 = scmp.ne.s32.totalorder %s125, %s128
    %p134 = scmp.eq.s32.totalorder %s10, 0
    %p135 = por %p133, %p134
    %p136 = scmp.ne.s32.totalorder %s125, %s128
    %p137 = scmp.eq.s32.totalorder %s15, 1
    %p138 = por %p136, %p137
    %p139 = scmp.ne.s32.totalorder %s128, %s129
    %p140 = scmp.eq.s32.totalorder %s15, 0
    %p141 = por %p139, %p140
    %p142 = scmp.ne.s32.totalorder %s128, %s129
    %p143 = scmp.eq.s32.totalorder %s16, 1
    %p144 = por %p142, %p143
    %p146 = scmp.ne.s32.totalorder %s129, %s145
    %p147 = scmp.eq.s32.totalorder %s16, 0
    %p148 = por %p146, %p147
    %p149 = scmp.le.s32.totalorder 1, %s10
    %p150 = scmp.lt.s32.totalorder %s10, 3
    %p151 = pnand %p149, %p150
    %p152 = pneg %p151
    // Predicated region
    $region9: #{res_unet_innermost_forward.15} parent=5 // pred_check
      _
    $region10: #{res_unet_innermost_forward.15} parent=5 // pred_check_branch
      %154 = sbr.rel (%p151) target = $region12
    $region11: #{res_unet_innermost_forward.15} parent=5 // pred_region
      %s155 = ssub.s32 %s10, 1
      // Predicated region
      $region13: #{res_unet_innermost_forward.15} parent=11 // pred_check
        %p156 = pneg %p71
      $region14: #{res_unet_innermost_forward.15} parent=11 // pred_check_branch
        %158 = sbr.rel (%p156) target = $region16
      $region15: #{res_unet_innermost_forward.15} parent=11 // pred_region
        _
      $region16: #{res_unet_innermost_forward.15} parent=11 // pred_fallthru
        _
      // Predicated region
      $region17: #{res_unet_innermost_forward.15} parent=11 // pred_check
        %p159 = pneg %p92
      $region18: #{res_unet_innermost_forward.15} parent=11 // pred_check_branch
        %161 = sbr.rel (%p159) target = $region20
      $region19: #{res_unet_innermost_forward.15} parent=11 // pred_region
        _
      $region20: #{res_unet_innermost_forward.15} parent=11 // pred_fallthru
        _
      // Predicated region
      $region21: #{res_unet_innermost_forward.15} parent=11 // pred_check
        %p162 = pneg %p113
      $region22: #{res_unet_innermost_forward.15} parent=11 // pred_check_branch
        %164 = sbr.rel (%p162) target = $region24
      $region23: #{res_unet_innermost_forward.15} parent=11 // pred_region
        _
      $region24: #{res_unet_innermost_forward.15} parent=11 // pred_fallthru
        _
    $region12: #{res_unet_innermost_forward.15} parent=5 // pred_fallthru
      _
    %p165 = scmp.lt.s32.totalorder %s10, 2
    // Predicated region
    $region25: #{res_unet_innermost_forward.15} parent=5 // pred_check
      %p166 = pneg %p165
    $region26: #{res_unet_innermost_forward.15} parent=5 // pred_check_branch
      %168 = sbr.rel (%p166) target = $region28
    $region27: #{res_unet_innermost_forward.15} parent=5 // pred_region
      // Predicated region
      $region29: #{res_unet_innermost_forward.15} parent=27 // pred_check
        %p169 = pneg %p44
      $region30: #{res_unet_innermost_forward.15} parent=27 // pred_check_branch
        %171 = sbr.rel (%p169) target = $region32
      $region31: #{res_unet_innermost_forward.15} parent=27 // pred_region
        %s172 = smul.u32 2, %s18
        %p173 = scmp.lt.s32.totalorder %s17, 1
        %s174 = scalar_select %p173, %s17, 1
        %p175 = scmp.lt.s32.totalorder %s172, 1
        %s176 = scalar_select %p175, %s172, 1
        %s177 = smul.addr %s174, 18
        %s178 = sadd.s32 %s176, %s177
        %s179 = smul.addr %s178, 4
        %s180 = scalar_lea.vmem %s0, %s179
        %s181 = smul.u32 2, %s18
      $region32: #{res_unet_innermost_forward.15} parent=27 // pred_fallthru
        _
    $region28: #{res_unet_innermost_forward.15} parent=5 // pred_fallthru
      _
    %p182 = scmp.le.s32.totalorder 1, %s10
    %p183 = scmp.lt.s32.totalorder %s10, 3
    %p184 = pnand %p182, %p183
    %p185 = pneg %p184
    // Predicated region
    $region33: #{res_unet_innermost_forward.15} parent=5 // pred_check
      _
    $region34: #{res_unet_innermost_forward.15} parent=5 // pred_check_branch
      %187 = sbr.rel (%p184) target = $region36
    $region35: #{res_unet_innermost_forward.15} parent=5 // pred_region
      %s188 = ssub.s32 %s10, 1
      %s189 = smul.u32 2, %s20
      %p190 = scmp.lt.s32.totalorder %s19, 1
      %s191 = scalar_select %p190, %s19, 1
      %p192 = scmp.lt.s32.totalorder %s189, 1
      %s193 = scalar_select %p192, %s189, 1
      %s194 = smul.addr %s191, 18
      %s195 = sadd.s32 %s193, %s194
      %s196 = smul.addr %s195, 4
      %s197 = scalar_lea.vmem %s0, %s196
      %p198 = pneg %p50
      %p199 = pneg %p47
      %p200 = pneg %p71
      %p201 = pneg %p68
      %p202 = pneg %p92
      %p203 = pneg %p89
      %p204 = pneg %p113
      %p205 = pneg %p110
      %p206 = pneg %p141
      %p207 = pneg %p138
      %s208 = smul.u32 2, %s20
      %p209 = scmp.lt.s32.totalorder %s19, 1
      %s210 = scalar_select %p209, %s19, 1
      %p211 = scmp.lt.s32.totalorder %s208, 1
      %s212 = scalar_select %p211, %s208, 1
      %s213 = smul.addr %s210, 2
      %s214 = sadd.s32 %s212, %s213
      %s215 = smul.addr %s214, 4
      %s216 = scalar_lea.vmem %s4, %s215
      %s217 = smul.u32 2, %s20
      %p218 = scmp.lt.s32.totalorder %s19, 1
      %s219 = scalar_select %p218, %s19, 1
      %p220 = scmp.lt.s32.totalorder %s217, 1
      %s221 = scalar_select %p220, %s217, 1
      %s222 = smul.addr %s219, 18
      %s223 = sadd.s32 %s221, %s222
      %s224 = smul.addr %s223, 4
      %s225 = scalar_lea.vmem %s0, %s224
      %s226 = smul.u32 2, %s20
      %s227 = smul.u32 2, %s20
      %p228 = scmp.lt.s32.totalorder %s19, 1
      %s229 = scalar_select %p228, %s19, 1
      %p230 = scmp.lt.s32.totalorder %s227, 1
      %s231 = scalar_select %p230, %s227, 1
      %s232 = smul.addr %s229, 2
      %s233 = sadd.s32 %s231, %s232
      %s234 = smul.addr %s233, 4
      %s235 = scalar_lea.vmem %s4, %s234
      %s236 = smul.u32 2, %s20
      %v238 = vld [vmem:[%s1] sm:$0x3]
      %v239 = vld [vmem:[%s225] sm:$0xff]
      %v240 = vld [vmem:[%s225 + $0x8] sm:$0xff]
      %v241 = vld [vmem:[%s225 + $0x10] sm:$0xff]
      %v242 = vld [vmem:[%s225 + $0x18] sm:$0xff]
      %v243 = vld [vmem:[%s225 + $0x20] sm:$0xff]
      %v244 = vld [vmem:[%s225 + $0x28] sm:$0xff]
      %v245 = vld [vmem:[%s225 + $0x30] sm:$0xff]
      %v246 = vld [vmem:[%s225 + $0x38] sm:$0xff]
      %v247 = vld [vmem:[%s225 + $0x40] sm:$0xff]
      %v257 = vunpack.c.l.b16 %v239
      %v258 = vunpack.c.h.b16 %v239
      %v259 = vunpack.c.l.b16 %v240
      %v260 = vunpack.c.h.b16 %v240
      %v261 = vunpack.c.l.b16 %v241
      %v262 = vunpack.c.h.b16 %v241
      %v263 = vunpack.c.l.b16 %v242
      %v264 = vunpack.c.h.b16 %v242
      %v265 = vunpack.c.l.b16 %v243
      %v266 = vunpack.c.h.b16 %v243
      %v267 = vunpack.c.l.b16 %v244
      %v268 = vunpack.c.h.b16 %v244
      %v269 = vunpack.c.l.b16 %v245
      %v270 = vunpack.c.h.b16 %v245
      %v271 = vunpack.c.l.b16 %v246
      %v272 = vunpack.c.h.b16 %v246
      %v273 = vunpack.c.l.b16 %v247
      %v274 = vunpack.c.h.b16 %v247
      %v275 = vpack.c.b16 %v259, %v257
      %v276 = vpack.c.b16 %v260, %v258
      %v277 = vpack.c.b16 %v263, %v261
      %v278 = vpack.c.b16 %v264, %v262
      %v279 = vpack.c.b16 %v267, %v265
      %v280 = vpack.c.b16 %v268, %v266
      %v281 = vpack.c.b16 %v271, %v269
      %v282 = vpack.c.b16 %v272, %v270
      %v283 = vpack.c.b16 %v273, %v273
      %v284 = vpack.c.b16 %v274, %v274
      %vm293 = vcmask 588800
      %v295 = vsel %vm293, %v238, 0
      %vm297 = vcmask 1043456
      %v299 = vsel %vm297, %v283, 0
      %v302 = vsel %vm297, %v284, 0
      %304 = vmatprep.subr.bf16.mxu0 %v276
      %305 = vmatpush1.bf16.msra.mxu0 %v275
      %306 = vmatprep.subr.bf16.mxu0 %v278
      %307 = vmatpush1.bf16.msra.mxu0 %v277
      %308 = vmatprep.subr.bf16.mxu0 %v280
      %309 = vmatpush1.bf16.msra.mxu0 %v279
      %310 = vmatprep.subr.bf16.mxu0 %v282
      %311 = vmatpush1.bf16.msra.mxu0 %v281
      %312 = vmatprep.subr.bf16.mxu0 %v302
      %313 = vmatpush1.bf16.msra.mxu0 %v299
      %314 = vmatprep.subr.bf16.mxu0 0
      %315 = vmatpush1.bf16.msra.mxu0 0
      %316 = vmatprep.subr.bf16.mxu0 0
      %317 = vmatpush1.bf16.msra.mxu0 0
      %318 = vmatprep.subr.bf16.mxu0 0
      %319 = vmatpush1.bf16.msra.mxu0 0
      %320 = vmatprep.subr.bf16.mxu0 0
      %321 = vmatpush1.bf16.msra.mxu0 0
      %322 = vmatprep.subr.bf16.mxu0 0
      %323 = vmatpush1.bf16.msra.mxu0 0
      %324 = vmatprep.subr.bf16.mxu0 0
      %325 = vmatpush1.bf16.msra.mxu0 0
      %326 = vmatprep.subr.bf16.mxu0 0
      %327 = vmatpush1.bf16.msra.mxu0 0
      %328 = vmatprep.subr.bf16.mxu0 0
      %329 = vmatpush1.bf16.msra.mxu0 0
      %330 = vmatprep.subr.bf16.mxu0 0
      %331 = vmatpush1.bf16.msra.mxu0 0
      %332 = vmatprep.subr.bf16.mxu0 0
      %333 = vmatpush1.bf16.msra.mxu0 0
      %334 = vmatprep.subr.bf16.mxu0 0
      %335 = vmatpush1.bf16.msra.mxu0 0
      %336 = vmatprep.mubr.bf16.mxu0 0
      %337 = vmatmul.mubr.bf16.gmra.mrb[0].mxu0 %v295
      %v338 = vpop.f32.mrb[0].mxu0
      %v339 = vadd.f32 0.0, %v338
      %v340 = vpop.f32.mrb[0].mxu0
      %v341 = vadd.f32 0.0, %v340
      %v342 = vpop.f32.mrb[0].mxu0
      %v343 = vpop.f32.mrb[0].mxu0
      %344 = vdwg.mxu0
      %v345 = vld [vmem:[%s2] sm:$0xf]
      %347 = vset.pattern.permute.xlu0 0
      %348 = vperm.xlu0 %347, %v345
      %v349 = vpop.permute.xlu0 %348
      %v351 = vmul.f32 %v339, %v349
      %v352 = vmul.f32 %v341, %v349
      %v353 = vld [vmem:[%s3] sm:$0xf]
      %355 = vset.pattern.permute.xlu0 0
      %356 = vperm.xlu0 %355, %v353
      %v357 = vpop.permute.xlu0 %356
      %v359 = vadd.f32 %v351, %v357
      %v360 = vadd.f32 %v352, %v357
      %v361 = vmax.f32 %v359, 0.0
      %v362 = vmax.f32 %v360, 0.0
      %v365 = vcombine.low %v361, %v362
      %367 = vst [vmem:[%s235] sm:$0xff] %v365
      %s368 = smul.u32 2, %s20
      %p369 = scmp.lt.s32.totalorder %s19, 1
      %s370 = scalar_select %p369, %s19, 1
      %p371 = scmp.lt.s32.totalorder %s368, 1
      %s372 = scalar_select %p371, %s368, 1
      %s373 = smul.addr %s370, 2
      %s374 = sadd.s32 %s372, %s373
      %s375 = smul.addr %s374, 4
      %s376 = scalar_lea.vmem %s4, %s375
      // Predicated region
      $region37: #{res_unet_innermost_forward.15} parent=35 // pred_check
        %p377 = pneg %p138
      $region38: #{res_unet_innermost_forward.15} parent=35 // pred_check_branch
        %379 = sbr.rel (%p377) target = $region40
      $region39: #{res_unet_innermost_forward.15} parent=35 // pred_region
        %s380 = smul.u32 2, %s20
      $region40: #{res_unet_innermost_forward.15} parent=35 // pred_fallthru
        _
    $region36: #{res_unet_innermost_forward.15} parent=5 // pred_fallthru
      _
    %p381 = scmp.le.s32.totalorder 2, %s10
    // Predicated region
    $region41: #{res_unet_innermost_forward.15} parent=5 // pred_check
      %p382 = pneg %p381
    $region42: #{res_unet_innermost_forward.15} parent=5 // pred_check_branch
      %384 = sbr.rel (%p382) target = $region44
    $region43: #{res_unet_innermost_forward.15} parent=5 // pred_region
      %s385 = ssub.s32 %s10, 2
      // Predicated region
      $region45: #{res_unet_innermost_forward.15} parent=43 // pred_check
        %p386 = pneg %p144
      $region46: #{res_unet_innermost_forward.15} parent=43 // pred_check_branch
        %388 = sbr.rel (%p386) target = $region48
      $region47: #{res_unet_innermost_forward.15} parent=43 // pred_region
        %s389 = smul.u32 2, %s22
        %p390 = scmp.lt.s32.totalorder %s21, 1
        %s391 = scalar_select %p390, %s21, 1
        %p392 = scmp.lt.s32.totalorder %s389, 1
        %s393 = scalar_select %p392, %s389, 1
        %s394 = smul.addr %s391, 2
        %s395 = sadd.s32 %s393, %s394
        %s396 = smul.addr %s395, 4
        %s397 = scalar_lea.vmem %s4, %s396
      $region48: #{res_unet_innermost_forward.15} parent=43 // pred_fallthru
        _
    $region44: #{res_unet_innermost_forward.15} parent=5 // pred_fallthru
      _
  $region6: #{res_unet_innermost_forward.15} parent=0 // loop_footer
    %s14 = sadd.s32 1, %s10
  $region7: #{res_unet_innermost_forward.15} parent=0 // loop_footer_branch
    %9 = sbr.rel target = $region3
  $region8: #{res_unet_innermost_forward.15} parent=0 // loop_exit
    _

// kernel: res_unet_innermost_forward.16
$region0: #{res_unet_innermost_forward.16}
  #allocation0 [shape = 'u32[]', space=smem, size = 0x4, offset = 0x4, fixed_abs, tag = 'smem constant byte address 0x4 - core index']
  #allocation1 [shape = 'u32[144,128]{1,0:T(1,128)}', space=vmem, size = 0x12000, scoped, tag = 'internal scratch']
  %s0 = inlined_call_operand.vmem [shape: bf16[2,36,256], index: 0, kind: input, shape index: {}]
  %s1 = inlined_call_operand.vmem [shape: bf16[4,36], index: 1, kind: input, shape index: {}]
  %s2 = inlined_call_operand.vmem [shape: f32[4,1], index: 2, kind: input, shape index: {}]
  %s3 = inlined_call_operand.vmem [shape: f32[4,1], index: 3, kind: input, shape index: {}]
  %s4 = inlined_call_operand.vmem [shape: f32[2,4,256], index: 4, kind: output, shape index: {}]
  %s5 = sld [smem:[#allocation0]]
  $region49: #{res_unet_innermost_forward.16} parent=0
    _
  %s7 = ssub.s32 1, %s5
  %s8 = scalar_select 0, %s7, %s5
  loop: start=0, step=1, limit=4
  $region2: #{res_unet_innermost_forward.16} parent=0 // loop_pre_header
    _
  $region3: #{res_unet_innermost_forward.16} parent=0 // loop_header
    %s10 = sphi 0, %s14
    %p11 = scmp.ge.s32.totalorder %s10, 4
    %s17 = sphi 0, %s29
    %s18 = sphi 0, %s25
    %s19 = sphi 0, %s17
    %s20 = sphi 0, %s18
    %s21 = sphi 0, %s19
    %s22 = sphi 0, %s20
    %s34 = sphi 0, %s36
    %s37 = sphi 0, %s34
    %s38 = sphi 0, %s37
    %s54 = sphi 0, %s38
    %s58 = sphi 0, %s58
    %s60 = sphi 0, %s58
    %s61 = sphi 0, %s60
    %s75 = sphi 0, %s61
    %s79 = sphi 0, %s79
    %s81 = sphi 0, %s79
    %s82 = sphi 0, %s81
    %s96 = sphi 0, %s82
    %s100 = sphi 0, %s100
    %s102 = sphi 0, %s100
    %s103 = sphi 0, %s102
    %s117 = sphi 0, %s103
    %s125 = sphi 0, %s127
    %s128 = sphi 0, %s125
    %s129 = sphi 0, %s128
    %s145 = sphi 0, %s129
  $region4: #{res_unet_innermost_forward.16} parent=0 // loop_header_branch
    %13 = sbr.rel (%p11) target = $region8
  $region5: #{res_unet_innermost_forward.16} parent=0 // loop_body
    %s15 = ssub.s32 %s10, 1
    %s16 = ssub.s32 %s10, 2
    %s23 = sadd.s32 1, %s18
    %p24 = scmp.ge.s32.totalorder %s23, 1
    %s25 = scalar_select %p24, 0, %s23
    %s26 = sadd.s32 1, %s17
    %s27 = scalar_select %p24, %s26, %s17
    %p28 = scmp.ge.s32.totalorder %s27, 2
    %s29 = scalar_select %p28, 0, %s27
    %s30 = ssub.s32 %s17, %s29
    %s31 = ssub.s32 %s18, %s25
    %s32 = sor.u32 %s30, %s31
    %p33 = scmp.eq.s32.totalorder %s32, 0
    %s35 = sadd.s32 %s34, 1
    %s36 = scalar_select %p33, %s34, %s35
    %p39 = pneg %p33
    %p40 = scmp.eq.s32.totalorder %s10, 1
    %p41 = por %p39, %p40
    %p42 = scmp.ne.s32.totalorder %s34, %s37
    %p43 = scmp.eq.s32.totalorder %s10, 0
    %p44 = por %p42, %p43
    %p45 = scmp.ne.s32.totalorder %s34, %s37
    %p46 = scmp.eq.s32.totalorder %s15, 1
    %p47 = por %p45, %p46
    %p48 = scmp.ne.s32.totalorder %s37, %s38
    %p49 = scmp.eq.s32.totalorder %s15, 0
    %p50 = por %p48, %p49
    %p51 = scmp.ne.s32.totalorder %s37, %s38
    %p52 = scmp.eq.s32.totalorder %s16, 1
    %p53 = por %p51, %p52
    %p55 = scmp.ne.s32.totalorder %s38, %s54
    %p56 = scmp.eq.s32.totalorder %s16, 0
    %p57 = por %p55, %p56
    %s59 = sadd.s32 %s58, 1
    %p62 = scmp.eq.s32.totalorder %s10, 1
    %p63 = scmp.ne.s32.totalorder %s58, %s60
    %p64 = scmp.eq.s32.totalorder %s10, 0
    %p65 = por %p63, %p64
    %p66 = scmp.ne.s32.totalorder %s58, %s60
    %p67 = scmp.eq.s32.totalorder %s15, 1
    %p68 = por %p66, %p67
    %p69 = scmp.ne.s32.totalorder %s60, %s61
    %p70 = scmp.eq.s32.totalorder %s15, 0
    %p71 = por %p69, %p70
    %p72 = scmp.ne.s32.totalorder %s60, %s61
    %p73 = scmp.eq.s32.totalorder %s16, 1
    %p74 = por %p72, %p73
    %p76 = scmp.ne.s32.totalorder %s61, %s75
    %p77 = scmp.eq.s32.totalorder %s16, 0
    %p78 = por %p76, %p77
    %s80 = sadd.s32 %s79, 1
    %p83 = scmp.eq.s32.totalorder %s10, 1
    %p84 = scmp.ne.s32.totalorder %s79, %s81
    %p85 = scmp.eq.s32.totalorder %s10, 0
    %p86 = por %p84, %p85
    %p87 = scmp.ne.s32.totalorder %s79, %s81
    %p88 = scmp.eq.s32.totalorder %s15, 1
    %p89 = por %p87, %p88
    %p90 = scmp.ne.s32.totalorder %s81, %s82
    %p91 = scmp.eq.s32.totalorder %s15, 0
    %p92 = por %p90, %p91
    %p93 = scmp.ne.s32.totalorder %s81, %s82
    %p94 = scmp.eq.s32.totalorder %s16, 1
    %p95 = por %p93, %p94
    %p97 = scmp.ne.s32.totalorder %s82, %s96
    %p98 = scmp.eq.s32.totalorder %s16, 0
    %p99 = por %p97, %p98
    %s101 = sadd.s32 %s100, 1
    %p104 = scmp.eq.s32.totalorder %s10, 1
    %p105 = scmp.ne.s32.totalorder %s100, %s102
    %p106 = scmp.eq.s32.totalorder %s10, 0
    %p107 = por %p105, %p106
    %p108 = scmp.ne.s32.totalorder %s100, %s102
    %p109 = scmp.eq.s32.totalorder %s15, 1
    %p110 = por %p108, %p109
    %p111 = scmp.ne.s32.totalorder %s102, %s103
    %p112 = scmp.eq.s32.totalorder %s15, 0
    %p113 = por %p111, %p112
    %p114 = scmp.ne.s32.totalorder %s102, %s103
    %p115 = scmp.eq.s32.totalorder %s16, 1
    %p116 = por %p114, %p115
    %p118 = scmp.ne.s32.totalorder %s103, %s117
    %p119 = scmp.eq.s32.totalorder %s16, 0
    %p120 = por %p118, %p119
    %s121 = ssub.s32 %s17, %s29
    %s122 = ssub.s32 %s18, %s25
    %s123 = sor.u32 %s121, %s122
    %p124 = scmp.eq.s32.totalorder %s123, 0
    %s126 = sadd.s32 %s125, 1
    %s127 = scalar_select %p124, %s125, %s126
    %p130 = pneg %p124
    %p131 = scmp.eq.s32.totalorder %s10, 1
    %p132 = por %p130, %p131
    %p133 = scmp.ne.s32.totalorder %s125, %s128
    %p134 = scmp.eq.s32.totalorder %s10, 0
    %p135 = por %p133, %p134
    %p136 = scmp.ne.s32.totalorder %s125, %s128
    %p137 = scmp.eq.s32.totalorder %s15, 1
    %p138 = por %p136, %p137
    %p139 = scmp.ne.s32.totalorder %s128, %s129
    %p140 = scmp.eq.s32.totalorder %s15, 0
    %p141 = por %p139, %p140
    %p142 = scmp.ne.s32.totalorder %s128, %s129
    %p143 = scmp.eq.s32.totalorder %s16, 1
    %p144 = por %p142, %p143
    %p146 = scmp.ne.s32.totalorder %s129, %s145
    %p147 = scmp.eq.s32.totalorder %s16, 0
    %p148 = por %p146, %p147
    %p149 = scmp.le.s32.totalorder 1, %s10
    %p150 = scmp.lt.s32.totalorder %s10, 3
    %p151 = pnand %p149, %p150
    %p152 = pneg %p151
    // Predicated region
    $region9: #{res_unet_innermost_forward.16} parent=5 // pred_check
      _
    $region10: #{res_unet_innermost_forward.16} parent=5 // pred_check_branch
      %154 = sbr.rel (%p151) target = $region12
    $region11: #{res_unet_innermost_forward.16} parent=5 // pred_region
      %s155 = ssub.s32 %s10, 1
      // Predicated region
      $region13: #{res_unet_innermost_forward.16} parent=11 // pred_check
        %p156 = pneg %p71
      $region14: #{res_unet_innermost_forward.16} parent=11 // pred_check_branch
        %158 = sbr.rel (%p156) target = $region16
      $region15: #{res_unet_innermost_forward.16} parent=11 // pred_region
        _
      $region16: #{res_unet_innermost_forward.16} parent=11 // pred_fallthru
        _
      // Predicated region
      $region17: #{res_unet_innermost_forward.16} parent=11 // pred_check
        %p159 = pneg %p92
      $region18: #{res_unet_innermost_forward.16} parent=11 // pred_check_branch
        %161 = sbr.rel (%p159) target = $region20
      $region19: #{res_unet_innermost_forward.16} parent=11 // pred_region
        _
      $region20: #{res_unet_innermost_forward.16} parent=11 // pred_fallthru
        _
      // Predicated region
      $region21: #{res_unet_innermost_forward.16} parent=11 // pred_check
        %p162 = pneg %p113
      $region22: #{res_unet_innermost_forward.16} parent=11 // pred_check_branch
        %164 = sbr.rel (%p162) target = $region24
      $region23: #{res_unet_innermost_forward.16} parent=11 // pred_region
        _
      $region24: #{res_unet_innermost_forward.16} parent=11 // pred_fallthru
        _
    $region12: #{res_unet_innermost_forward.16} parent=5 // pred_fallthru
      _
    %p165 = scmp.lt.s32.totalorder %s10, 2
    // Predicated region
    $region25: #{res_unet_innermost_forward.16} parent=5 // pred_check
      %p166 = pneg %p165
    $region26: #{res_unet_innermost_forward.16} parent=5 // pred_check_branch
      %168 = sbr.rel (%p166) target = $region28
    $region27: #{res_unet_innermost_forward.16} parent=5 // pred_region
      // Predicated region
      $region29: #{res_unet_innermost_forward.16} parent=27 // pred_check
        %p169 = pneg %p44
      $region30: #{res_unet_innermost_forward.16} parent=27 // pred_check_branch
        %171 = sbr.rel (%p169) target = $region32
      $region31: #{res_unet_innermost_forward.16} parent=27 // pred_region
        %s172 = smul.u32 2, %s18
        %p173 = scmp.lt.s32.totalorder %s17, 1
        %s174 = scalar_select %p173, %s17, 1
        %p175 = scmp.lt.s32.totalorder %s172, 1
        %s176 = scalar_select %p175, %s172, 1
        %s177 = smul.addr %s174, 10
        %s178 = sadd.s32 %s176, %s177
        %s179 = smul.addr %s178, 4
        %s180 = scalar_lea.vmem %s0, %s179
        %s181 = smul.u32 2, %s18
      $region32: #{res_unet_innermost_forward.16} parent=27 // pred_fallthru
        _
    $region28: #{res_unet_innermost_forward.16} parent=5 // pred_fallthru
      _
    %p182 = scmp.le.s32.totalorder 1, %s10
    %p183 = scmp.lt.s32.totalorder %s10, 3
    %p184 = pnand %p182, %p183
    %p185 = pneg %p184
    // Predicated region
    $region33: #{res_unet_innermost_forward.16} parent=5 // pred_check
      _
    $region34: #{res_unet_innermost_forward.16} parent=5 // pred_check_branch
      %187 = sbr.rel (%p184) target = $region36
    $region35: #{res_unet_innermost_forward.16} parent=5 // pred_region
      %s188 = ssub.s32 %s10, 1
      %s189 = smul.u32 2, %s20
      %p190 = scmp.lt.s32.totalorder %s19, 1
      %s191 = scalar_select %p190, %s19, 1
      %p192 = scmp.lt.s32.totalorder %s189, 1
      %s193 = scalar_select %p192, %s189, 1
      %s194 = smul.addr %s191, 10
      %s195 = sadd.s32 %s193, %s194
      %s196 = smul.addr %s195, 4
      %s197 = scalar_lea.vmem %s0, %s196
      %p198 = pneg %p50
      %p199 = pneg %p47
      %p200 = pneg %p71
      %p201 = pneg %p68
      %p202 = pneg %p92
      %p203 = pneg %p89
      %p204 = pneg %p113
      %p205 = pneg %p110
      %p206 = pneg %p141
      %p207 = pneg %p138
      %s208 = smul.u32 2, %s20
      %p209 = scmp.lt.s32.totalorder %s19, 1
      %s210 = scalar_select %p209, %s19, 1
      %p211 = scmp.lt.s32.totalorder %s208, 1
      %s212 = scalar_select %p211, %s208, 1
      %s213 = smul.addr %s210, 2
      %s214 = sadd.s32 %s212, %s213
      %s215 = smul.addr %s214, 4
      %s216 = scalar_lea.vmem %s4, %s215
      %s217 = smul.u32 2, %s20
      %p218 = scmp.lt.s32.totalorder %s19, 1
      %s219 = scalar_select %p218, %s19, 1
      %p220 = scmp.lt.s32.totalorder %s217, 1
      %s221 = scalar_select %p220, %s217, 1
      %s222 = smul.addr %s219, 10
      %s223 = sadd.s32 %s221, %s222
      %s224 = smul.addr %s223, 4
      %s225 = scalar_lea.vmem %s0, %s224
      %s226 = smul.u32 2, %s20
      %s227 = smul.u32 2, %s20
      %p228 = scmp.lt.s32.totalorder %s19, 1
      %s229 = scalar_select %p228, %s19, 1
      %p230 = scmp.lt.s32.totalorder %s227, 1
      %s231 = scalar_select %p230, %s227, 1
      %s232 = smul.addr %s229, 2
      %s233 = sadd.s32 %s231, %s232
      %s234 = smul.addr %s233, 4
      %s235 = scalar_lea.vmem %s4, %s234
      %s236 = smul.u32 2, %s20
      %v238 = vld [vmem:[%s1] sm:$0x3]
      %v239 = vld [vmem:[%s225] sm:$0xff]
      %v240 = vld [vmem:[%s225 + $0x8] sm:$0xff]
      %v241 = vld [vmem:[%s225 + $0x10] sm:$0xff]
      %v242 = vld [vmem:[%s225 + $0x18] sm:$0xff]
      %v243 = vld [vmem:[%s225 + $0x20] sm:$0x33]
      %v249 = vunpack.c.l.b16 %v239
      %v250 = vunpack.c.h.b16 %v239
      %v251 = vunpack.c.l.b16 %v240
      %v252 = vunpack.c.h.b16 %v240
      %v253 = vunpack.c.l.b16 %v241
      %v254 = vunpack.c.h.b16 %v241
      %v255 = vunpack.c.l.b16 %v242
      %v256 = vunpack.c.h.b16 %v242
      %v257 = vunpack.c.l.b16 %v243
      %v258 = vunpack.c.h.b16 %v243
      %v259 = vpack.c.b16 %v251, %v249
      %v260 = vpack.c.b16 %v252, %v250
      %v261 = vpack.c.b16 %v255, %v253
      %v262 = vpack.c.b16 %v256, %v254
      %v263 = vpack.c.b16 %v257, %v257
      %v264 = vpack.c.b16 %v258, %v258
      %vm269 = vcmask 293888
      %v271 = vsel %vm269, %v238, 0
      %vm273 = vcmask 1041408
      %v275 = vsel %vm273, %v263, 0
      %v278 = vsel %vm273, %v264, 0
      %280 = vmatprep.subr.bf16.mxu0 %v260
      %281 = vmatpush1.bf16.msra.mxu0 %v259
      %282 = vmatprep.subr.bf16.mxu0 %v262
      %283 = vmatpush1.bf16.msra.mxu0 %v261
      %284 = vmatprep.subr.bf16.mxu0 %v278
      %285 = vmatpush1.bf16.msra.mxu0 %v275
      %286 = vmatprep.subr.bf16.mxu0 0
      %287 = vmatpush1.bf16.msra.mxu0 0
      %288 = vmatprep.subr.bf16.mxu0 0
      %289 = vmatpush1.bf16.msra.mxu0 0
      %290 = vmatprep.subr.bf16.mxu0 0
      %291 = vmatpush1.bf16.msra.mxu0 0
      %292 = vmatprep.subr.bf16.mxu0 0
      %293 = vmatpush1.bf16.msra.mxu0 0
      %294 = vmatprep.subr.bf16.mxu0 0
      %295 = vmatpush1.bf16.msra.mxu0 0
      %296 = vmatprep.subr.bf16.mxu0 0
      %297 = vmatpush1.bf16.msra.mxu0 0
      %298 = vmatprep.subr.bf16.mxu0 0
      %299 = vmatpush1.bf16.msra.mxu0 0
      %300 = vmatprep.subr.bf16.mxu0 0
      %301 = vmatpush1.bf16.msra.mxu0 0
      %302 = vmatprep.subr.bf16.mxu0 0
      %303 = vmatpush1.bf16.msra.mxu0 0
      %304 = vmatprep.subr.bf16.mxu0 0
      %305 = vmatpush1.bf16.msra.mxu0 0
      %306 = vmatprep.subr.bf16.mxu0 0
      %307 = vmatpush1.bf16.msra.mxu0 0
      %308 = vmatprep.subr.bf16.mxu0 0
      %309 = vmatpush1.bf16.msra.mxu0 0
      %310 = vmatprep.subr.bf16.mxu0 0
      %311 = vmatpush1.bf16.msra.mxu0 0
      %312 = vmatprep.mubr.bf16.mxu0 0
      %313 = vmatmul.mubr.bf16.gmra.mrb[0].mxu0 %v271
      %v314 = vpop.f32.mrb[0].mxu0
      %v315 = vadd.f32 0.0, %v314
      %v316 = vpop.f32.mrb[0].mxu0
      %v317 = vadd.f32 0.0, %v316
      %v318 = vpop.f32.mrb[0].mxu0
      %v319 = vpop.f32.mrb[0].mxu0
      %320 = vdwg.mxu0
      %v321 = vld [vmem:[%s2] sm:$0xf]
      %323 = vset.pattern.permute.xlu0 0
      %324 = vperm.xlu0 %323, %v321
      %v325 = vpop.permute.xlu0 %324
      %v327 = vmul.f32 %v315, %v325
      %v328 = vmul.f32 %v317, %v325
      %v329 = vld [vmem:[%s3] sm:$0xf]
      %331 = vset.pattern.permute.xlu0 0
      %332 = vperm.xlu0 %331, %v329
      %v333 = vpop.permute.xlu0 %332
      %v335 = vadd.f32 %v327, %v333
      %v336 = vadd.f32 %v328, %v333
      %v337 = vmax.f32 %v335, 0.0
      %v338 = vmax.f32 %v336, 0.0
      %v341 = vcombine.low %v337, %v338
      %343 = vst [vmem:[%s235] sm:$0xff] %v341
      %s344 = smul.u32 2, %s20
      %p345 = scmp.lt.s32.totalorder %s19, 1
      %s346 = scalar_select %p345, %s19, 1
      %p347 = scmp.lt.s32.totalorder %s344, 1
      %s348 = scalar_select %p347, %s344, 1
      %s349 = smul.addr %s346, 2
      %s350 = sadd.s32 %s348, %s349
      %s351 = smul.addr %s350, 4
      %s352 = scalar_lea.vmem %s4, %s351
      // Predicated region
      $region37: #{res_unet_innermost_forward.16} parent=35 // pred_check
        %p353 = pneg %p138
      $region38: #{res_unet_innermost_forward.16} parent=35 // pred_check_branch
        %355 = sbr.rel (%p353) target = $region40
      $region39: #{res_unet_innermost_forward.16} parent=35 // pred_region
        %s356 = smul.u32 2, %s20
      $region40: #{res_unet_innermost_forward.16} parent=35 // pred_fallthru
        _
    $region36: #{res_unet_innermost_forward.16} parent=5 // pred_fallthru
      _
    %p357 = scmp.le.s32.totalorder 2, %s10
    // Predicated region
    $region41: #{res_unet_innermost_forward.16} parent=5 // pred_check
      %p358 = pneg %p357
    $region42: #{res_unet_innermost_forward.16} parent=5 // pred_check_branch
      %360 = sbr.rel (%p358) target = $region44
    $region43: #{res_unet_innermost_forward.16} parent=5 // pred_region
      %s361 = ssub.s32 %s10, 2
      // Predicated region
      $region45: #{res_unet_innermost_forward.16} parent=43 // pred_check
        %p362 = pneg %p144
      $region46: #{res_unet_innermost_forward.16} parent=43 // pred_check_branch
        %364 = sbr.rel (%p362) target = $region48
      $region47: #{res_unet_innermost_forward.16} parent=43 // pred_region
        %s365 = smul.u32 2, %s22
        %p366 = scmp.lt.s32.totalorder %s21, 1
        %s367 = scalar_select %p366, %s21, 1
        %p368 = scmp.lt.s32.totalorder %s365, 1
        %s369 = scalar_select %p368, %s365, 1
        %s370 = smul.addr %s367, 2
        %s371 = sadd.s32 %s369, %s370
        %s372 = smul.addr %s371, 4
        %s373 = scalar_lea.vmem %s4, %s372
      $region48: #{res_unet_innermost_forward.16} parent=43 // pred_fallthru
        _
    $region44: #{res_unet_innermost_forward.16} parent=5 // pred_fallthru
      _
  $region6: #{res_unet_innermost_forward.16} parent=0 // loop_footer
    %s14 = sadd.s32 1, %s10
  $region7: #{res_unet_innermost_forward.16} parent=0 // loop_footer_branch
    %9 = sbr.rel target = $region3
  $region8: #{res_unet_innermost_forward.16} parent=0 // loop_exit
    _

// kernel: res_unet_innermost_forward.17
$region0: #{res_unet_innermost_forward.17}
  #allocation0 [shape = 'u32[]', space=smem, size = 0x4, offset = 0x4, fixed_abs, tag = 'smem constant byte address 0x4 - core index']
  #allocation1 [shape = 'u32[144,128]{1,0:T(1,128)}', space=vmem, size = 0x12000, scoped, tag = 'internal scratch']
  %s0 = inlined_call_operand.vmem [shape: bf16[2,36,256], index: 0, kind: input, shape index: {}]
  %s1 = inlined_call_operand.vmem [shape: bf16[4,36], index: 1, kind: input, shape index: {}]
  %s2 = inlined_call_operand.vmem [shape: f32[4,1], index: 2, kind: input, shape index: {}]
  %s3 = inlined_call_operand.vmem [shape: f32[4,1], index: 3, kind: input, shape index: {}]
  %s4 = inlined_call_operand.vmem [shape: f32[2,4,256], index: 4, kind: input, shape index: {}]
  %s5 = inlined_call_operand.vmem [shape: f32[2,4,256], index: 5, kind: output, shape index: {}]
  %s6 = sld [smem:[#allocation0]]
  $region53: #{res_unet_innermost_forward.17} parent=0
    _
  %s8 = ssub.s32 1, %s6
  %s9 = scalar_select 0, %s8, %s6
  loop: start=0, step=1, limit=4
  $region2: #{res_unet_innermost_forward.17} parent=0 // loop_pre_header
    _
  $region3: #{res_unet_innermost_forward.17} parent=0 // loop_header
    %s11 = sphi 0, %s15
    %p12 = scmp.ge.s32.totalorder %s11, 4
    %s18 = sphi 0, %s30
    %s19 = sphi 0, %s26
    %s20 = sphi 0, %s18
    %s21 = sphi 0, %s19
    %s22 = sphi 0, %s20
    %s23 = sphi 0, %s21
    %s35 = sphi 0, %s37
    %s38 = sphi 0, %s35
    %s39 = sphi 0, %s38
    %s55 = sphi 0, %s39
    %s59 = sphi 0, %s59
    %s61 = sphi 0, %s59
    %s62 = sphi 0, %s61
    %s76 = sphi 0, %s62
    %s80 = sphi 0, %s80
    %s82 = sphi 0, %s80
    %s83 = sphi 0, %s82
    %s97 = sphi 0, %s83
    %s101 = sphi 0, %s101
    %s103 = sphi 0, %s101
    %s104 = sphi 0, %s103
    %s118 = sphi 0, %s104
    %s126 = sphi 0, %s128
    %s129 = sphi 0, %s126
    %s130 = sphi 0, %s129
    %s146 = sphi 0, %s130
    %s154 = sphi 0, %s156
    %s157 = sphi 0, %s154
    %s158 = sphi 0, %s157
    %s174 = sphi 0, %s158
  $region4: #{res_unet_innermost_forward.17} parent=0 // loop_header_branch
    %14 = sbr.rel (%p12) target = $region8
  $region5: #{res_unet_innermost_forward.17} parent=0 // loop_body
    %s16 = ssub.s32 %s11, 1
    %s17 = ssub.s32 %s11, 2
    %s24 = sadd.s32 1, %s19
    %p25 = scmp.ge.s32.totalorder %s24, 1
    %s26 = scalar_select %p25, 0, %s24
    %s27 = sadd.s32 1, %s18
    %s28 = scalar_select %p25, %s27, %s18
    %p29 = scmp.ge.s32.totalorder %s28, 2
    %s30 = scalar_select %p29, 0, %s28
    %s31 = ssub.s32 %s18, %s30
    %s32 = ssub.s32 %s19, %s26
    %s33 = sor.u32 %s31, %s32
    %p34 = scmp.eq.s32.totalorder %s33, 0
    %s36 = sadd.s32 %s35, 1
    %s37 = scalar_select %p34, %s35, %s36
    %p40 = pneg %p34
    %p41 = scmp.eq.s32.totalorder %s11, 1
    %p42 = por %p40, %p41
    %p43 = scmp.ne.s32.totalorder %s35, %s38
    %p44 = scmp.eq.s32.totalorder %s11, 0
    %p45 = por %p43, %p44
    %p46 = scmp.ne.s32.totalorder %s35, %s38
    %p47 = scmp.eq.s32.totalorder %s16, 1
    %p48 = por %p46, %p47
    %p49 = scmp.ne.s32.totalorder %s38, %s39
    %p50 = scmp.eq.s32.totalorder %s16, 0
    %p51 = por %p49, %p50
    %p52 = scmp.ne.s32.totalorder %s38, %s39
    %p53 = scmp.eq.s32.totalorder %s17, 1
    %p54 = por %p52, %p53
    %p56 = scmp.ne.s32.totalorder %s39, %s55
    %p57 = scmp.eq.s32.totalorder %s17, 0
    %p58 = por %p56, %p57
    %s60 = sadd.s32 %s59, 1
    %p63 = scmp.eq.s32.totalorder %s11, 1
    %p64 = scmp.ne.s32.totalorder %s59, %s61
    %p65 = scmp.eq.s32.totalorder %s11, 0
    %p66 = por %p64, %p65
    %p67 = scmp.ne.s32.totalorder %s59, %s61
    %p68 = scmp.eq.s32.totalorder %s16, 1
    %p69 = por %p67, %p68
    %p70 = scmp.ne.s32.totalorder %s61, %s62
    %p71 = scmp.eq.s32.totalorder %s16, 0
    %p72 = por %p70, %p71
    %p73 = scmp.ne.s32.totalorder %s61, %s62
    %p74 = scmp.eq.s32.totalorder %s17, 1
    %p75 = por %p73, %p74
    %p77 = scmp.ne.s32.totalorder %s62, %s76
    %p78 = scmp.eq.s32.totalorder %s17, 0
    %p79 = por %p77, %p78
    %s81 = sadd.s32 %s80, 1
    %p84 = scmp.eq.s32.totalorder %s11, 1
    %p85 = scmp.ne.s32.totalorder %s80, %s82
    %p86 = scmp.eq.s32.totalorder %s11, 0
    %p87 = por %p85, %p86
    %p88 = scmp.ne.s32.totalorder %s80, %s82
    %p89 = scmp.eq.s32.totalorder %s16, 1
    %p90 = por %p88, %p89
    %p91 = scmp.ne.s32.totalorder %s82, %s83
    %p92 = scmp.eq.s32.totalorder %s16, 0
    %p93 = por %p91, %p92
    %p94 = scmp.ne.s32.totalorder %s82, %s83
    %p95 = scmp.eq.s32.totalorder %s17, 1
    %p96 = por %p94, %p95
    %p98 = scmp.ne.s32.totalorder %s83, %s97
    %p99 = scmp.eq.s32.totalorder %s17, 0
    %p100 = por %p98, %p99
    %s102 = sadd.s32 %s101, 1
    %p105 = scmp.eq.s32.totalorder %s11, 1
    %p106 = scmp.ne.s32.totalorder %s101, %s103
    %p107 = scmp.eq.s32.totalorder %s11, 0
    %p108 = por %p106, %p107
    %p109 = scmp.ne.s32.totalorder %s101, %s103
    %p110 = scmp.eq.s32.totalorder %s16, 1
    %p111 = por %p109, %p110
    %p112 = scmp.ne.s32.totalorder %s103, %s104
    %p113 = scmp.eq.s32.totalorder %s16, 0
    %p114 = por %p112, %p113
    %p115 = scmp.ne.s32.totalorder %s103, %s104
    %p116 = scmp.eq.s32.totalorder %s17, 1
    %p117 = por %p115, %p116
    %p119 = scmp.ne.s32.totalorder %s104, %s118
    %p120 = scmp.eq.s32.totalorder %s17, 0
    %p121 = por %p119, %p120
    %s122 = ssub.s32 %s18, %s30
    %s123 = ssub.s32 %s19, %s26
    %s124 = sor.u32 %s122, %s123
    %p125 = scmp.eq.s32.totalorder %s124, 0
    %s127 = sadd.s32 %s126, 1
    %s128 = scalar_select %p125, %s126, %s127
    %p131 = pneg %p125
    %p132 = scmp.eq.s32.totalorder %s11, 1
    %p133 = por %p131, %p132
    %p134 = scmp.ne.s32.totalorder %s126, %s129
    %p135 = scmp.eq.s32.totalorder %s11, 0
    %p136 = por %p134, %p135
    %p137 = scmp.ne.s32.totalorder %s126, %s129
    %p138 = scmp.eq.s32.totalorder %s16, 1
    %p139 = por %p137, %p138
    %p140 = scmp.ne.s32.totalorder %s129, %s130
    %p141 = scmp.eq.s32.totalorder %s16, 0
    %p142 = por %p140, %p141
    %p143 = scmp.ne.s32.totalorder %s129, %s130
    %p144 = scmp.eq.s32.totalorder %s17, 1
    %p145 = por %p143, %p144
    %p147 = scmp.ne.s32.totalorder %s130, %s146
    %p148 = scmp.eq.s32.totalorder %s17, 0
    %p149 = por %p147, %p148
    %s150 = ssub.s32 %s18, %s30
    %s151 = ssub.s32 %s19, %s26
    %s152 = sor.u32 %s150, %s151
    %p153 = scmp.eq.s32.totalorder %s152, 0
    %s155 = sadd.s32 %s154, 1
    %s156 = scalar_select %p153, %s154, %s155
    %p159 = pneg %p153
    %p160 = scmp.eq.s32.totalorder %s11, 1
    %p161 = por %p159, %p160
    %p162 = scmp.ne.s32.totalorder %s154, %s157
    %p163 = scmp.eq.s32.totalorder %s11, 0
    %p164 = por %p162, %p163
    %p165 = scmp.ne.s32.totalorder %s154, %s157
    %p166 = scmp.eq.s32.totalorder %s16, 1
    %p167 = por %p165, %p166
    %p168 = scmp.ne.s32.totalorder %s157, %s158
    %p169 = scmp.eq.s32.totalorder %s16, 0
    %p170 = por %p168, %p169
    %p171 = scmp.ne.s32.totalorder %s157, %s158
    %p172 = scmp.eq.s32.totalorder %s17, 1
    %p173 = por %p171, %p172
    %p175 = scmp.ne.s32.totalorder %s158, %s174
    %p176 = scmp.eq.s32.totalorder %s17, 0
    %p177 = por %p175, %p176
    %p178 = scmp.le.s32.totalorder 1, %s11
    %p179 = scmp.lt.s32.totalorder %s11, 3
    %p180 = pnand %p178, %p179
    %p181 = pneg %p180
    // Predicated region
    $region9: #{res_unet_innermost_forward.17} parent=5 // pred_check
      _
    $region10: #{res_unet_innermost_forward.17} parent=5 // pred_check_branch
      %183 = sbr.rel (%p180) target = $region12
    $region11: #{res_unet_innermost_forward.17} parent=5 // pred_region
      %s184 = ssub.s32 %s11, 1
      // Predicated region
      $region13: #{res_unet_innermost_forward.17} parent=11 // pred_check
        %p185 = pneg %p72
      $region14: #{res_unet_innermost_forward.17} parent=11 // pred_check_branch
        %187 = sbr.rel (%p185) target = $region16
      $region15: #{res_unet_innermost_forward.17} parent=11 // pred_region
        _
      $region16: #{res_unet_innermost_forward.17} parent=11 // pred_fallthru
        _
      // Predicated region
      $region17: #{res_unet_innermost_forward.17} parent=11 // pred_check
        %p188 = pneg %p93
      $region18: #{res_unet_innermost_forward.17} parent=11 // pred_check_branch
        %190 = sbr.rel (%p188) target = $region20
      $region19: #{res_unet_innermost_forward.17} parent=11 // pred_region
        _
      $region20: #{res_unet_innermost_forward.17} parent=11 // pred_fallthru
        _
      // Predicated region
      $region21: #{res_unet_innermost_forward.17} parent=11 // pred_check
        %p191 = pneg %p114
      $region22: #{res_unet_innermost_forward.17} parent=11 // pred_check_branch
        %193 = sbr.rel (%p191) target = $region24
      $region23: #{res_unet_innermost_forward.17} parent=11 // pred_region
        _
      $region24: #{res_unet_innermost_forward.17} parent=11 // pred_fallthru
        _
    $region12: #{res_unet_innermost_forward.17} parent=5 // pred_fallthru
      _
    %p194 = scmp.lt.s32.totalorder %s11, 2
    // Predicated region
    $region25: #{res_unet_innermost_forward.17} parent=5 // pred_check
      %p195 = pneg %p194
    $region26: #{res_unet_innermost_forward.17} parent=5 // pred_check_branch
      %197 = sbr.rel (%p195) target = $region28
    $region27: #{res_unet_innermost_forward.17} parent=5 // pred_region
      // Predicated region
      $region29: #{res_unet_innermost_forward.17} parent=27 // pred_check
        %p198 = pneg %p45
      $region30: #{res_unet_innermost_forward.17} parent=27 // pred_check_branch
        %200 = sbr.rel (%p198) target = $region32
      $region31: #{res_unet_innermost_forward.17} parent=27 // pred_region
        %s201 = smul.u32 2, %s19
        %p202 = scmp.lt.s32.totalorder %s18, 1
        %s203 = scalar_select %p202, %s18, 1
        %p204 = scmp.lt.s32.totalorder %s201, 1
        %s205 = scalar_select %p204, %s201, 1
        %s206 = smul.addr %s203, 10
        %s207 = sadd.s32 %s205, %s206
        %s208 = smul.addr %s207, 4
        %s209 = scalar_lea.vmem %s0, %s208
        %s210 = smul.u32 2, %s19
      $region32: #{res_unet_innermost_forward.17} parent=27 // pred_fallthru
        _
      // Predicated region
      $region33: #{res_unet_innermost_forward.17} parent=27 // pred_check
        %p211 = pneg %p136
      $region34: #{res_unet_innermost_forward.17} parent=27 // pred_check_branch
        %213 = sbr.rel (%p211) target = $region36
      $region35: #{res_unet_innermost_forward.17} parent=27 // pred_region
        %s214 = smul.u32 2, %s19
        %p215 = scmp.lt.s32.totalorder %s18, 1
        %s216 = scalar_select %p215, %s18, 1
        %p217 = scmp.lt.s32.totalorder %s214, 1
        %s218 = scalar_select %p217, %s214, 1
        %s219 = smul.addr %s216, 2
        %s220 = sadd.s32 %s218, %s219
        %s221 = smul.addr %s220, 4
        %s222 = scalar_lea.vmem %s4, %s221
        %s223 = smul.u32 2, %s19
      $region36: #{res_unet_innermost_forward.17} parent=27 // pred_fallthru
        _
    $region28: #{res_unet_innermost_forward.17} parent=5 // pred_fallthru
      _
    %p224 = scmp.le.s32.totalorder 1, %s11
    %p225 = scmp.lt.s32.totalorder %s11, 3
    %p226 = pnand %p224, %p225
    %p227 = pneg %p226
    // Predicated region
    $region37: #{res_unet_innermost_forward.17} parent=5 // pred_check
      _
    $region38: #{res_unet_innermost_forward.17} parent=5 // pred_check_branch
      %229 = sbr.rel (%p226) target = $region40
    $region39: #{res_unet_innermost_forward.17} parent=5 // pred_region
      %s230 = ssub.s32 %s11, 1
      %s231 = smul.u32 2, %s21
      %p232 = scmp.lt.s32.totalorder %s20, 1
      %s233 = scalar_select %p232, %s20, 1
      %p234 = scmp.lt.s32.totalorder %s231, 1
      %s235 = scalar_select %p234, %s231, 1
      %s236 = smul.addr %s233, 10
      %s237 = sadd.s32 %s235, %s236
      %s238 = smul.addr %s237, 4
      %s239 = scalar_lea.vmem %s0, %s238
      %p240 = pneg %p51
      %p241 = pneg %p48
      %p242 = pneg %p72
      %p243 = pneg %p69
      %p244 = pneg %p93
      %p245 = pneg %p90
      %p246 = pneg %p114
      %p247 = pneg %p111
      %s248 = smul.u32 2, %s21
      %p249 = scmp.lt.s32.totalorder %s20, 1
      %s250 = scalar_select %p249, %s20, 1
      %p251 = scmp.lt.s32.totalorder %s248, 1
      %s252 = scalar_select %p251, %s248, 1
      %s253 = smul.addr %s250, 2
      %s254 = sadd.s32 %s252, %s253
      %s255 = smul.addr %s254, 4
      %s256 = scalar_lea.vmem %s4, %s255
      %p257 = pneg %p142
      %p258 = pneg %p139
      %p259 = pneg %p170
      %p260 = pneg %p167
      %s261 = smul.u32 2, %s21
      %p262 = scmp.lt.s32.totalorder %s20, 1
      %s263 = scalar_select %p262, %s20, 1
      %p264 = scmp.lt.s32.totalorder %s261, 1
      %s265 = scalar_select %p264, %s261, 1
      %s266 = smul.addr %s263, 2
      %s267 = sadd.s32 %s265, %s266
      %s268 = smul.addr %s267, 4
      %s269 = scalar_lea.vmem %s5, %s268
      %s270 = smul.u32 2, %s21
      %p271 = scmp.lt.s32.totalorder %s20, 1
      %s272 = scalar_select %p271, %s20, 1
      %p273 = scmp.lt.s32.totalorder %s270, 1
      %s274 = scalar_select %p273, %s270, 1
      %s275 = smul.addr %s272, 10
      %s276 = sadd.s32 %s274, %s275
      %s277 = smul.addr %s276, 4
      %s278 = scalar_lea.vmem %s0, %s277
      %s279 = smul.u32 2, %s21
      %s280 = smul.u32 2, %s21
      %p281 = scmp.lt.s32.totalorder %s20, 1
      %s282 = scalar_select %p281, %s20, 1
      %p283 = scmp.lt.s32.totalorder %s280, 1
      %s284 = scalar_select %p283, %s280, 1
      %s285 = smul.addr %s282, 2
      %s286 = sadd.s32 %s284, %s285
      %s287 = smul.addr %s286, 4
      %s288 = scalar_lea.vmem %s4, %s287
      %s289 = smul.u32 2, %s21
      %s290 = smul.u32 2, %s21
      %p291 = scmp.lt.s32.totalorder %s20, 1
      %s292 = scalar_select %p291, %s20, 1
      %p293 = scmp.lt.s32.totalorder %s290, 1
      %s294 = scalar_select %p293, %s290, 1
      %s295 = smul.addr %s292, 2
      %s296 = sadd.s32 %s294, %s295
      %s297 = smul.addr %s296, 4
      %s298 = scalar_lea.vmem %s5, %s297
      %s299 = smul.u32 2, %s21
      %v301 = vld [vmem:[%s1] sm:$0x3]
      %v302 = vld [vmem:[%s278] sm:$0xff]
      %v303 = vld [vmem:[%s278 + $0x8] sm:$0xff]
      %v304 = vld [vmem:[%s278 + $0x10] sm:$0xff]
      %v305 = vld [vmem:[%s278 + $0x18] sm:$0xff]
      %v306 = vld [vmem:[%s278 + $0x20] sm:$0x33]
      %v312 = vunpack.c.l.b16 %v302
      %v313 = vunpack.c.h.b16 %v302
      %v314 = vunpack.c.l.b16 %v303
      %v315 = vunpack.c.h.b16 %v303
      %v316 = vunpack.c.l.b16 %v304
      %v317 = vunpack.c.h.b16 %v304
      %v318 = vunpack.c.l.b16 %v305
      %v319 = vunpack.c.h.b16 %v305
      %v320 = vunpack.c.l.b16 %v306
      %v321 = vunpack.c.h.b16 %v306
      %v322 = vpack.c.b16 %v314, %v312
      %v323 = vpack.c.b16 %v315, %v313
      %v324 = vpack.c.b16 %v318, %v316
      %v325 = vpack.c.b16 %v319, %v317
      %v326 = vpack.c.b16 %v320, %v320
      %v327 = vpack.c.b16 %v321, %v321
      %vm332 = vcmask 293888
      %v334 = vsel %vm332, %v301, 0
      %vm336 = vcmask 1041408
      %v338 = vsel %vm336, %v326, 0
      %v341 = vsel %vm336, %v327, 0
      %343 = vmatprep.subr.bf16.mxu0 %v323
      %344 = vmatpush1.bf16.msra.mxu0 %v322
      %345 = vmatprep.subr.bf16.mxu0 %v325
      %346 = vmatpush1.bf16.msra.mxu0 %v324
      %347 = vmatprep.subr.bf16.mxu0 %v341
      %348 = vmatpush1.bf16.msra.mxu0 %v338
      %349 = vmatprep.subr.bf16.mxu0 0
      %350 = vmatpush1.bf16.msra.mxu0 0
      %351 = vmatprep.subr.bf16.mxu0 0
      %352 = vmatpush1.bf16.msra.mxu0 0
      %353 = vmatprep.subr.bf16.mxu0 0
      %354 = vmatpush1.bf16.msra.mxu0 0
      %355 = vmatprep.subr.bf16.mxu0 0
      %356 = vmatpush1.bf16.msra.mxu0 0
      %357 = vmatprep.subr.bf16.mxu0 0
      %358 = vmatpush1.bf16.msra.mxu0 0
      %359 = vmatprep.subr.bf16.mxu0 0
      %360 = vmatpush1.bf16.msra.mxu0 0
      %361 = vmatprep.subr.bf16.mxu0 0
      %362 = vmatpush1.bf16.msra.mxu0 0
      %363 = vmatprep.subr.bf16.mxu0 0
      %364 = vmatpush1.bf16.msra.mxu0 0
      %365 = vmatprep.subr.bf16.mxu0 0
      %366 = vmatpush1.bf16.msra.mxu0 0
      %367 = vmatprep.subr.bf16.mxu0 0
      %368 = vmatpush1.bf16.msra.mxu0 0
      %369 = vmatprep.subr.bf16.mxu0 0
      %370 = vmatpush1.bf16.msra.mxu0 0
      %371 = vmatprep.subr.bf16.mxu0 0
      %372 = vmatpush1.bf16.msra.mxu0 0
      %373 = vmatprep.subr.bf16.mxu0 0
      %374 = vmatpush1.bf16.msra.mxu0 0
      %375 = vmatprep.mubr.bf16.mxu0 0
      %376 = vmatmul.mubr.bf16.gmra.mrb[0].mxu0 %v334
      %v377 = vpop.f32.mrb[0].mxu0
      %v378 = vadd.f32 0.0, %v377
      %v379 = vpop.f32.mrb[0].mxu0
      %v380 = vadd.f32 0.0, %v379
      %v381 = vpop.f32.mrb[0].mxu0
      %v382 = vpop.f32.mrb[0].mxu0
      %383 = vdwg.mxu0
      %v384 = vld [vmem:[%s2] sm:$0xf]
      %386 = vset.pattern.permute.xlu0 0
      %387 = vperm.xlu0 %386, %v384
      %v388 = vpop.permute.xlu0 %387
      %v390 = vmul.f32 %v378, %v388
      %v391 = vmul.f32 %v380, %v388
      %v392 = vld [vmem:[%s3] sm:$0xf]
      %394 = vset.pattern.permute.xlu0 0
      %395 = vperm.xlu0 %394, %v392
      %v396 = vpop.permute.xlu0 %395
      %v398 = vadd.f32 %v390, %v396
      %v399 = vadd.f32 %v391, %v396
      %v400 = vld [vmem:[%s288] sm:$0xff]
      %v402 = vcombine.high %v400, %v400
      %v404 = vadd.f32 %v398, %v400
      %v405 = vadd.f32 %v399, %v402
      %v406 = vmax.f32 %v404, 0.0
      %v407 = vmax.f32 %v405, 0.0
      %v410 = vcombine.low %v406, %v407
      %412 = vst [vmem:[%s298] sm:$0xff] %v410
      %s413 = smul.u32 2, %s21
      %p414 = scmp.lt.s32.totalorder %s20, 1
      %s415 = scalar_select %p414, %s20, 1
      %p416 = scmp.lt.s32.totalorder %s413, 1
      %s417 = scalar_select %p416, %s413, 1
      %s418 = smul.addr %s415, 2
      %s419 = sadd.s32 %s417, %s418
      %s420 = smul.addr %s419, 4
      %s421 = scalar_lea.vmem %s5, %s420
      // Predicated region
      $region41: #{res_unet_innermost_forward.17} parent=39 // pred_check
        %p422 = pneg %p167
      $region42: #{res_unet_innermost_forward.17} parent=39 // pred_check_branch
        %424 = sbr.rel (%p422) target = $region44
      $region43: #{res_unet_innermost_forward.17} parent=39 // pred_region
        %s425 = smul.u32 2, %s21
      $region44: #{res_unet_innermost_forward.17} parent=39 // pred_fallthru
        _
    $region40: #{res_unet_innermost_forward.17} parent=5 // pred_fallthru
      _
    %p426 = scmp.le.s32.totalorder 2, %s11
    // Predicated region
    $region45: #{res_unet_innermost_forward.17} parent=5 // pred_check
      %p427 = pneg %p426
    $region46: #{res_unet_innermost_forward.17} parent=5 // pred_check_branch
      %429 = sbr.rel (%p427) target = $region48
    $region47: #{res_unet_innermost_forward.17} parent=5 // pred_region
      %s430 = ssub.s32 %s11, 2
      // Predicated region
      $region49: #{res_unet_innermost_forward.17} parent=47 // pred_check
        %p431 = pneg %p173
      $region50: #{res_unet_innermost_forward.17} parent=47 // pred_check_branch
        %433 = sbr.rel (%p431) target = $region52
      $region51: #{res_unet_innermost_forward.17} parent=47 // pred_region
        %s434 = smul.u32 2, %s23
        %p435 = scmp.lt.s32.totalorder %s22, 1
        %s436 = scalar_select %p435, %s22, 1
        %p437 = scmp.lt.s32.totalorder %s434, 1
        %s438 = scalar_select %p437, %s434, 1
        %s439 = smul.addr %s436, 2
        %s440 = sadd.s32 %s438, %s439
        %s441 = smul.addr %s440, 4
        %s442 = scalar_lea.vmem %s5, %s441
      $region52: #{res_unet_innermost_forward.17} parent=47 // pred_fallthru
        _
    $region48: #{res_unet_innermost_forward.17} parent=5 // pred_fallthru
      _
  $region6: #{res_unet_innermost_forward.17} parent=0 // loop_footer
    %s15 = sadd.s32 1, %s11
  $region7: #{res_unet_innermost_forward.17} parent=0 // loop_footer_branch
    %10 = sbr.rel target = $region3
  $region8: #{res_unet_innermost_forward.17} parent=0 // loop_exit
    _

</llo_original>
